<compile_context>
chip_gen: v7x
topology: tpu7x:2x2x1
jax: 0.10.0
libtpu: 0.0.40
codegen_flags: <defaults>
</compile_context>

<pallas_src>
import math

import jax
import jax.numpy as jnp
from jax.experimental import pallas as pl
from jax.experimental.pallas import tpu as pltpu

H1 = 64   # hidden size of lstm1
H2 = 32   # hidden size of lstm2


def lstm_classifier_kernel(x2d_ref,    # (T*B, D)   time-major flattened input
                           wih1_ref,   # (D, 4*H1)  gate columns ordered [i,f,o,g]
                           whh1_ref,   # (H1, 4*H1)
                           b1_ref,     # (1, 4*H1)  b_ih1 + b_hh1 (reordered)
                           wih2_ref,   # (H1, 4*H2)
                           whh2_ref,   # (H2, 4*H2)
                           b2_ref,     # (1, 4*H2)  b_ih2 + b_hh2 (reordered)
                           wfc_ref,    # (1, H2)
                           bfc_ref,    # (1, 1)
                           out_ref,    # (B, 1)
                           xp_ref):    # VMEM scratch (T*B, 4*H1)
    B = out_ref.shape[0]
    TB, _ = x2d_ref.shape
    T = TB // B

    whh1 = whh1_ref[...]
    wih2 = wih2_ref[...]
    whh2 = whh2_ref[...]

    # ---- prologue: all layer-1 input projections in a single MXU matmul,
    # with the layer-1 bias folded in once (off the serial recurrence chain).
    xp_ref[...] = (jnp.dot(x2d_ref[...], wih1_ref[...],
                           preferred_element_type=jnp.float32)
                   + b1_ref[...])

    # Hoist the layer-2 bias broadcast out of the time loop.
    b2b = jnp.broadcast_to(b2_ref[...], (B, 4 * H2))

    def gates_to_hc(gates, c, hidden):
        # Column order [i, f, o, g]: one sigmoid over 3H contiguous lanes and
        # one tanh over the last H lanes (2 EUP pushes per cell).
        sig = jax.nn.sigmoid(gates[:, :3 * hidden])
        g = jnp.tanh(gates[:, 3 * hidden:])
        i = sig[:, :hidden]
        f = sig[:, hidden:2 * hidden]
        o = sig[:, 2 * hidden:]
        c_new = f * c + i * g
        h_new = o * jnp.tanh(c_new)
        return h_new, c_new

    h1 = jnp.zeros((B, H1), jnp.float32)
    c1 = jnp.zeros((B, H1), jnp.float32)
    h2 = jnp.zeros((B, H2), jnp.float32)
    c2 = jnp.zeros((B, H2), jnp.float32)

    # T is small and static: fully unroll so the scheduler can overlap the MXU
    # push of one step with the VPU/EUP gate math of adjacent steps.
    for t in range(T):
        # layer 1: only the recurrent matmul remains on the serial chain
        g1 = xp_ref[pl.ds(t * B, B), :] + jnp.dot(
            h1, whh1, preferred_element_type=jnp.float32)
        h1n, c1 = gates_to_hc(g1, c1, H1)
        # dropout1 (p=0.2): identity in eval mode

        # layer 2: h2 @ whh2 depends only on the PREVIOUS step's h2, so the
        # scheduler can issue it while layer-1 gate math for this step runs.
        g2 = (jnp.dot(h2, whh2, preferred_element_type=jnp.float32)
              + jnp.dot(h1n, wih2, preferred_element_type=jnp.float32)
              + b2b)
        h2, c2 = gates_to_hc(g2, c2, H2)
        # dropout2 (p=0.2): identity in eval mode
        h1 = h1n

    # fc on the last timestep's hidden state of lstm2:
    # VPU multiply + lane reduction instead of a width-1 MXU matmul.
    out_ref[...] = (jnp.sum(h2 * wfc_ref[...], axis=-1, keepdims=True)
                    + bfc_ref[...])


def _reorder_gates(w):
    """Reorder PyTorch gate blocks [i, f, g, o] -> [i, f, o, g] along axis 0."""
    i, f, g, o = jnp.split(w, 4, axis=0)
    return jnp.concatenate([i, f, o, g], axis=0)


def init_params(key, input_size):
    """Deterministic parameters with the same shapes as the PyTorch module."""
    ks = jax.random.split(key, 12)

    def uni(k, shape, bound):
        return jax.random.uniform(k, shape, jnp.float32, -bound, bound)

    k1 = 1.0 / math.sqrt(H1)
    k2 = 1.0 / math.sqrt(H2)
    kf = 1.0 / math.sqrt(H2)

    params = {
        # lstm1: weight_ih (4H1, D), weight_hh (4H1, H1), biases (4H1,)
        "w_ih1": uni(ks[0], (4 * H1, input_size), k1),
        "w_hh1": uni(ks[1], (4 * H1, H1), k1),
        "b_ih1": uni(ks[2], (4 * H1,), k1),
        "b_hh1": uni(ks[3], (4 * H1,), k1),
        # lstm2
        "w_ih2": uni(ks[4], (4 * H2, H1), k2),
        "w_hh2": uni(ks[5], (4 * H2, H2), k2),
        "b_ih2": uni(ks[6], (4 * H2,), k2),
        "b_hh2": uni(ks[7], (4 * H2,), k2),
        # fc: (1, 32) weight, (1,) bias
        "w_fc": uni(ks[8], (1, H2), kf),
        "b_fc": uni(ks[9], (1,), kf),
    }
    return params


@jax.jit
def lstm_classifier_forward(x, params):
    """x: (B, T, D) batch-first float32, as in the PyTorch module."""
    B, T, D = x.shape
    # time-major flatten so the prologue can do one (T*B, D) x (D, 4*H1) matmul
    x2d = jnp.transpose(x, (1, 0, 2)).reshape(T * B, D).astype(jnp.float32)

    # Pre-transpose weights to (in, 4H) with gate columns [i, f, o, g];
    # fold the two LSTM biases of each layer together.
    wih1 = _reorder_gates(params["w_ih1"]).T                        # (D,  4H1)
    whh1 = _reorder_gates(params["w_hh1"]).T                        # (H1, 4H1)
    b1 = _reorder_gates(params["b_ih1"] + params["b_hh1"]).reshape(1, 4 * H1)
    wih2 = _reorder_gates(params["w_ih2"]).T                        # (H1, 4H2)
    whh2 = _reorder_gates(params["w_hh2"]).T                        # (H2, 4H2)
    b2 = _reorder_gates(params["b_ih2"] + params["b_hh2"]).reshape(1, 4 * H2)
    wfc = params["w_fc"].reshape(1, H2)                             # (1, H2)
    bfc = params["b_fc"].reshape(1, 1)                              # (1, 1)

    vmem = pl.BlockSpec(memory_space=pltpu.MemorySpace.VMEM)
    out = pl.pallas_call(
        lstm_classifier_kernel,
        out_shape=jax.ShapeDtypeStruct((B, 1), jnp.float32),
        in_specs=[vmem] * 9,
        out_specs=vmem,
        scratch_shapes=[pltpu.VMEM((T * B, 4 * H1), jnp.float32)],
    )(x2d, wih1, whh1, b1, wih2, whh2, b2, wfc, bfc)

    # matches PyTorch out.squeeze() for B > 1 (B=1 would give a 0-d tensor)
    return out[:, 0]


def ref_forward(x, params):
    """Pure-JAX reference of the PyTorch forward (eval mode, gate order i,f,g,o)."""
    B, T, D = x.shape

    def cell(xt, h, c, w_ih, w_hh, b_ih, b_hh, hidden):
        g = xt @ w_ih.T + b_ih + h @ w_hh.T + b_hh
        i = jax.nn.sigmoid(g[:, 0 * hidden:1 * hidden])
        f = jax.nn.sigmoid(g[:, 1 * hidden:2 * hidden])
        gg = jnp.tanh(g[:, 2 * hidden:3 * hidden])
        o = jax.nn.sigmoid(g[:, 3 * hidden:4 * hidden])
        c = f * c + i * gg
        h = o * jnp.tanh(c)
        return h, c

    h1 = jnp.zeros((B, H1)); c1 = jnp.zeros((B, H1))
    h2 = jnp.zeros((B, H2)); c2 = jnp.zeros((B, H2))
    for t in range(T):
        h1, c1 = cell(x[:, t, :], h1, c1, params["w_ih1"], params["w_hh1"],
                      params["b_ih1"], params["b_hh1"], H1)
        h2, c2 = cell(h1, h2, c2, params["w_ih2"], params["w_hh2"],
                      params["b_ih2"], params["b_hh2"], H2)
    out = h2 @ params["w_fc"].T + params["b_fc"]
    return out[:, 0]


if __name__ == "__main__":
    B, T, D = 2, 8, 8          # batch=2, seq=8, input_size=8
    key = jax.random.PRNGKey(0)
    kx, kp = jax.random.split(key)
    x = jax.random.normal(kx, (B, T, D), jnp.float32)
    params = init_params(kp, D)

    y = jax.block_until_ready(lstm_classifier_forward(x, params))
    y_ref = ref_forward(x, params)

    assert y.shape == (B,)
    assert jnp.allclose(y, y_ref, atol=1e-4, rtol=1e-4), (y, y_ref)
    print("KERNEL_OK")
</pallas_src>

<mosaic_0001>
module attributes {stable_mosaic.version = 11 : i64} {
  func.func @lstm_classifier_kernel(%arg0: memref<16x8xf32, #tpu.memory_space<vmem>>, %arg1: memref<8x256xf32, #tpu.memory_space<vmem>>, %arg2: memref<64x256xf32, #tpu.memory_space<vmem>>, %arg3: memref<1x256xf32, #tpu.memory_space<vmem>>, %arg4: memref<64x128xf32, #tpu.memory_space<vmem>>, %arg5: memref<32x128xf32, #tpu.memory_space<vmem>>, %arg6: memref<1x128xf32, #tpu.memory_space<vmem>>, %arg7: memref<1x32xf32, #tpu.memory_space<vmem>>, %arg8: memref<1x1xf32, #tpu.memory_space<vmem>>, %arg9: memref<2x1xf32, #tpu.memory_space<vmem>>, %arg10: memref<16x256xf32, #tpu.memory_space<vmem>>) attributes {dimension_semantics = [], scalar_prefetch = 0 : i64, scratch_operands = 1 : i64, tpu.core_type = #tpu.core_type<tc>} {
    %c0 = arith.constant 0 : index
    %c0_0 = arith.constant 0 : index
    %0 = vector.load %arg2[%c0, %c0_0] : memref<64x256xf32, #tpu.memory_space<vmem>>, vector<64x256xf32>
    %c0_1 = arith.constant 0 : index
    %c0_2 = arith.constant 0 : index
    %1 = vector.load %arg4[%c0_1, %c0_2] : memref<64x128xf32, #tpu.memory_space<vmem>>, vector<64x128xf32>
    %c0_3 = arith.constant 0 : index
    %c0_4 = arith.constant 0 : index
    %2 = vector.load %arg5[%c0_3, %c0_4] : memref<32x128xf32, #tpu.memory_space<vmem>>, vector<32x128xf32>
    %c0_5 = arith.constant 0 : index
    %c0_6 = arith.constant 0 : index
    %3 = vector.load %arg0[%c0_5, %c0_6] : memref<16x8xf32, #tpu.memory_space<vmem>>, vector<16x8xf32>
    %c0_7 = arith.constant 0 : index
    %c0_8 = arith.constant 0 : index
    %4 = vector.load %arg1[%c0_7, %c0_8] : memref<8x256xf32, #tpu.memory_space<vmem>>, vector<8x256xf32>
    %cst = arith.constant dense<0.000000e+00> : vector<16x256xf32>
    %5 = tpu.matmul %3, %4, %cst {dimension_numbers = #tpu.dot_dimension_numbers<[1], [0], [0], [1], [0, 0, 1, 1], [], []>} : vector<16x8xf32>, vector<8x256xf32>, vector<16x256xf32> -> vector<16x256xf32>
    %c0_9 = arith.constant 0 : index
    %c0_10 = arith.constant 0 : index
    %6 = vector.load %arg3[%c0_9, %c0_10] : memref<1x256xf32, #tpu.memory_space<vmem>>, vector<1x256xf32>
    %7 = vector.broadcast %6 : vector<1x256xf32> to vector<16x256xf32>
    %8 = arith.addf %5, %7 : vector<16x256xf32>
    %c0_11 = arith.constant 0 : index
    %c0_12 = arith.constant 0 : index
    %9 = vector.load %arg10[%c0_11, %c0_12] : memref<16x256xf32, #tpu.memory_space<vmem>>, vector<16x256xf32>
    tpu.vector_store %arg10[%c0_11, %c0_12], %8 {strides = array<i32>} : memref<16x256xf32, #tpu.memory_space<vmem>>, vector<16x256xf32>,
    %c0_13 = arith.constant 0 : index
    %c0_14 = arith.constant 0 : index
    %10 = vector.load %arg6[%c0_13, %c0_14] : memref<1x128xf32, #tpu.memory_space<vmem>>, vector<1x128xf32>
    %11 = vector.shape_cast %10 : vector<1x128xf32> to vector<1x128xf32>
    %12 = vector.broadcast %11 : vector<1x128xf32> to vector<2x128xf32>
    %cst_15 = arith.constant 0.000000e+00 : f32
    %13 = vector.broadcast %cst_15 : f32 to vector<2x64xf32>
    %cst_16 = arith.constant 0.000000e+00 : f32
    %14 = vector.broadcast %cst_16 : f32 to vector<2x64xf32>
    %cst_17 = arith.constant 0.000000e+00 : f32
    %15 = vector.broadcast %cst_17 : f32 to vector<2x32xf32>
    %cst_18 = arith.constant 0.000000e+00 : f32
    %16 = vector.broadcast %cst_18 : f32 to vector<2x32xf32>
    %c0_19 = arith.constant 0 : index
    %c0_20 = arith.constant 0 : index
    %17 = vector.load %arg10[%c0_19, %c0_20] : memref<16x256xf32, #tpu.memory_space<vmem>>, vector<2x256xf32>
    %cst_21 = arith.constant dense<0.000000e+00> : vector<2x256xf32>
    %18 = tpu.matmul %13, %0, %cst_21 {dimension_numbers = #tpu.dot_dimension_numbers<[1], [0], [0], [1], [0, 0, 1, 1], [], []>} : vector<2x64xf32>, vector<64x256xf32>, vector<2x256xf32> -> vector<2x256xf32>
    %19 = arith.addf %17, %18 : vector<2x256xf32>
    %20 = vector.extract_strided_slice %19 {offsets = [0, 0], sizes = [2, 192], strides = [1, 1]} : vector<2x256xf32> to vector<2x192xf32>
    %21 = arith.negf %20 : vector<2x192xf32>
    %22 = math.exp %21 : vector<2x192xf32>
    %cst_22 = arith.constant 1.000000e+00 : f32
    %23 = vector.broadcast %cst_22 : f32 to vector<2x192xf32>
    %24 = arith.addf %23, %22 : vector<2x192xf32>
    %25 = arith.divf %23, %24 : vector<2x192xf32>
    %26 = vector.extract_strided_slice %19 {offsets = [0, 192], sizes = [2, 64], strides = [1, 1]} : vector<2x256xf32> to vector<2x64xf32>
    %27 = math.tanh %26 : vector<2x64xf32>
    %28 = vector.extract_strided_slice %25 {offsets = [0, 0], sizes = [2, 64], strides = [1, 1]} : vector<2x192xf32> to vector<2x64xf32>
    %29 = vector.extract_strided_slice %25 {offsets = [0, 64], sizes = [2, 64], strides = [1, 1]} : vector<2x192xf32> to vector<2x64xf32>
    %30 = vector.extract_strided_slice %25 {offsets = [0, 128], sizes = [2, 64], strides = [1, 1]} : vector<2x192xf32> to vector<2x64xf32>
    %31 = arith.mulf %29, %14 : vector<2x64xf32>
    %32 = arith.mulf %28, %27 : vector<2x64xf32>
    %33 = arith.addf %31, %32 : vector<2x64xf32>
    %34 = math.tanh %33 : vector<2x64xf32>
    %35 = arith.mulf %30, %34 : vector<2x64xf32>
    %cst_23 = arith.constant dense<0.000000e+00> : vector<2x128xf32>
    %36 = tpu.matmul %15, %2, %cst_23 {dimension_numbers = #tpu.dot_dimension_numbers<[1], [0], [0], [1], [0, 0, 1, 1], [], []>} : vector<2x32xf32>, vector<32x128xf32>, vector<2x128xf32> -> vector<2x128xf32>
    %cst_24 = arith.constant dense<0.000000e+00> : vector<2x128xf32>
    %37 = tpu.matmul %35, %1, %cst_24 {dimension_numbers = #tpu.dot_dimension_numbers<[1], [0], [0], [1], [0, 0, 1, 1], [], []>} : vector<2x64xf32>, vector<64x128xf32>, vector<2x128xf32> -> vector<2x128xf32>
    %38 = arith.addf %36, %37 : vector<2x128xf32>
    %39 = arith.addf %38, %12 : vector<2x128xf32>
    %40 = vector.extract_strided_slice %39 {offsets = [0, 0], sizes = [2, 96], strides = [1, 1]} : vector<2x128xf32> to vector<2x96xf32>
    %41 = arith.negf %40 : vector<2x96xf32>
    %42 = math.exp %41 : vector<2x96xf32>
    %cst_25 = arith.constant 1.000000e+00 : f32
    %43 = vector.broadcast %cst_25 : f32 to vector<2x96xf32>
    %44 = arith.addf %43, %42 : vector<2x96xf32>
    %45 = arith.divf %43, %44 : vector<2x96xf32>
    %46 = vector.extract_strided_slice %39 {offsets = [0, 96], sizes = [2, 32], strides = [1, 1]} : vector<2x128xf32> to vector<2x32xf32>
    %47 = math.tanh %46 : vector<2x32xf32>
    %48 = vector.extract_strided_slice %45 {offsets = [0, 0], sizes = [2, 32], strides = [1, 1]} : vector<2x96xf32> to vector<2x32xf32>
    %49 = vector.extract_strided_slice %45 {offsets = [0, 32], sizes = [2, 32], strides = [1, 1]} : vector<2x96xf32> to vector<2x32xf32>
    %50 = vector.extract_strided_slice %45 {offsets = [0, 64], sizes = [2, 32], strides = [1, 1]} : vector<2x96xf32> to vector<2x32xf32>
    %51 = arith.mulf %49, %16 : vector<2x32xf32>
    %52 = arith.mulf %48, %47 : vector<2x32xf32>
    %53 = arith.addf %51, %52 : vector<2x32xf32>
    %54 = math.tanh %53 : vector<2x32xf32>
    %55 = arith.mulf %50, %54 : vector<2x32xf32>
    %c2 = arith.constant 2 : index
    %c0_26 = arith.constant 0 : index
    %56 = vector.load %arg10[%c2, %c0_26] : memref<16x256xf32, #tpu.memory_space<vmem>>, vector<2x256xf32>
    %cst_27 = arith.constant dense<0.000000e+00> : vector<2x256xf32>
    %57 = tpu.matmul %35, %0, %cst_27 {dimension_numbers = #tpu.dot_dimension_numbers<[1], [0], [0], [1], [0, 0, 1, 1], [], []>} : vector<2x64xf32>, vector<64x256xf32>, vector<2x256xf32> -> vector<2x256xf32>
    %58 = arith.addf %56, %57 : vector<2x256xf32>
    %59 = vector.extract_strided_slice %58 {offsets = [0, 0], sizes = [2, 192], strides = [1, 1]} : vector<2x256xf32> to vector<2x192xf32>
    %60 = arith.negf %59 : vector<2x192xf32>
    %61 = math.exp %60 : vector<2x192xf32>
    %cst_28 = arith.constant 1.000000e+00 : f32
    %62 = vector.broadcast %cst_28 : f32 to vector<2x192xf32>
    %63 = arith.addf %62, %61 : vector<2x192xf32>
    %64 = arith.divf %62, %63 : vector<2x192xf32>
    %65 = vector.extract_strided_slice %58 {offsets = [0, 192], sizes = [2, 64], strides = [1, 1]} : vector<2x256xf32> to vector<2x64xf32>
    %66 = math.tanh %65 : vector<2x64xf32>
    %67 = vector.extract_strided_slice %64 {offsets = [0, 0], sizes = [2, 64], strides = [1, 1]} : vector<2x192xf32> to vector<2x64xf32>
    %68 = vector.extract_strided_slice %64 {offsets = [0, 64], sizes = [2, 64], strides = [1, 1]} : vector<2x192xf32> to vector<2x64xf32>
    %69 = vector.extract_strided_slice %64 {offsets = [0, 128], sizes = [2, 64], strides = [1, 1]} : vector<2x192xf32> to vector<2x64xf32>
    %70 = arith.mulf %68, %33 : vector<2x64xf32>
    %71 = arith.mulf %67, %66 : vector<2x64xf32>
    %72 = arith.addf %70, %71 : vector<2x64xf32>
    %73 = math.tanh %72 : vector<2x64xf32>
    %74 = arith.mulf %69, %73 : vector<2x64xf32>
    %cst_29 = arith.constant dense<0.000000e+00> : vector<2x128xf32>
    %75 = tpu.matmul %55, %2, %cst_29 {dimension_numbers = #tpu.dot_dimension_numbers<[1], [0], [0], [1], [0, 0, 1, 1], [], []>} : vector<2x32xf32>, vector<32x128xf32>, vector<2x128xf32> -> vector<2x128xf32>
    %cst_30 = arith.constant dense<0.000000e+00> : vector<2x128xf32>
    %76 = tpu.matmul %74, %1, %cst_30 {dimension_numbers = #tpu.dot_dimension_numbers<[1], [0], [0], [1], [0, 0, 1, 1], [], []>} : vector<2x64xf32>, vector<64x128xf32>, vector<2x128xf32> -> vector<2x128xf32>
    %77 = arith.addf %75, %76 : vector<2x128xf32>
    %78 = arith.addf %77, %12 : vector<2x128xf32>
    %79 = vector.extract_strided_slice %78 {offsets = [0, 0], sizes = [2, 96], strides = [1, 1]} : vector<2x128xf32> to vector<2x96xf32>
    %80 = arith.negf %79 : vector<2x96xf32>
    %81 = math.exp %80 : vector<2x96xf32>
    %cst_31 = arith.constant 1.000000e+00 : f32
    %82 = vector.broadcast %cst_31 : f32 to vector<2x96xf32>
    %83 = arith.addf %82, %81 : vector<2x96xf32>
    %84 = arith.divf %82, %83 : vector<2x96xf32>
    %85 = vector.extract_strided_slice %78 {offsets = [0, 96], sizes = [2, 32], strides = [1, 1]} : vector<2x128xf32> to vector<2x32xf32>
    %86 = math.tanh %85 : vector<2x32xf32>
    %87 = vector.extract_strided_slice %84 {offsets = [0, 0], sizes = [2, 32], strides = [1, 1]} : vector<2x96xf32> to vector<2x32xf32>
    %88 = vector.extract_strided_slice %84 {offsets = [0, 32], sizes = [2, 32], strides = [1, 1]} : vector<2x96xf32> to vector<2x32xf32>
    %89 = vector.extract_strided_slice %84 {offsets = [0, 64], sizes = [2, 32], strides = [1, 1]} : vector<2x96xf32> to vector<2x32xf32>
    %90 = arith.mulf %88, %53 : vector<2x32xf32>
    %91 = arith.mulf %87, %86 : vector<2x32xf32>
    %92 = arith.addf %90, %91 : vector<2x32xf32>
    %93 = math.tanh %92 : vector<2x32xf32>
    %94 = arith.mulf %89, %93 : vector<2x32xf32>
    %c4 = arith.constant 4 : index
    %c0_32 = arith.constant 0 : index
    %95 = vector.load %arg10[%c4, %c0_32] : memref<16x256xf32, #tpu.memory_space<vmem>>, vector<2x256xf32>
    %cst_33 = arith.constant dense<0.000000e+00> : vector<2x256xf32>
    %96 = tpu.matmul %74, %0, %cst_33 {dimension_numbers = #tpu.dot_dimension_numbers<[1], [0], [0], [1], [0, 0, 1, 1], [], []>} : vector<2x64xf32>, vector<64x256xf32>, vector<2x256xf32> -> vector<2x256xf32>
    %97 = arith.addf %95, %96 : vector<2x256xf32>
    %98 = vector.extract_strided_slice %97 {offsets = [0, 0], sizes = [2, 192], strides = [1, 1]} : vector<2x256xf32> to vector<2x192xf32>
    %99 = arith.negf %98 : vector<2x192xf32>
    %100 = math.exp %99 : vector<2x192xf32>
    %cst_34 = arith.constant 1.000000e+00 : f32
    %101 = vector.broadcast %cst_34 : f32 to vector<2x192xf32>
    %102 = arith.addf %101, %100 : vector<2x192xf32>
    %103 = arith.divf %101, %102 : vector<2x192xf32>
    %104 = vector.extract_strided_slice %97 {offsets = [0, 192], sizes = [2, 64], strides = [1, 1]} : vector<2x256xf32> to vector<2x64xf32>
    %105 = math.tanh %104 : vector<2x64xf32>
    %106 = vector.extract_strided_slice %103 {offsets = [0, 0], sizes = [2, 64], strides = [1, 1]} : vector<2x192xf32> to vector<2x64xf32>
    %107 = vector.extract_strided_slice %103 {offsets = [0, 64], sizes = [2, 64], strides = [1, 1]} : vector<2x192xf32> to vector<2x64xf32>
    %108 = vector.extract_strided_slice %103 {offsets = [0, 128], sizes = [2, 64], strides = [1, 1]} : vector<2x192xf32> to vector<2x64xf32>
    %109 = arith.mulf %107, %72 : vector<2x64xf32>
    %110 = arith.mulf %106, %105 : vector<2x64xf32>
    %111 = arith.addf %109, %110 : vector<2x64xf32>
    %112 = math.tanh %111 : vector<2x64xf32>
    %113 = arith.mulf %108, %112 : vector<2x64xf32>
    %cst_35 = arith.constant dense<0.000000e+00> : vector<2x128xf32>
    %114 = tpu.matmul %94, %2, %cst_35 {dimension_numbers = #tpu.dot_dimension_numbers<[1], [0], [0], [1], [0, 0, 1, 1], [], []>} : vector<2x32xf32>, vector<32x128xf32>, vector<2x128xf32> -> vector<2x128xf32>
    %cst_36 = arith.constant dense<0.000000e+00> : vector<2x128xf32>
    %115 = tpu.matmul %113, %1, %cst_36 {dimension_numbers = #tpu.dot_dimension_numbers<[1], [0], [0], [1], [0, 0, 1, 1], [], []>} : vector<2x64xf32>, vector<64x128xf32>, vector<2x128xf32> -> vector<2x128xf32>
    %116 = arith.addf %114, %115 : vector<2x128xf32>
    %117 = arith.addf %116, %12 : vector<2x128xf32>
    %118 = vector.extract_strided_slice %117 {offsets = [0, 0], sizes = [2, 96], strides = [1, 1]} : vector<2x128xf32> to vector<2x96xf32>
    %119 = arith.negf %118 : vector<2x96xf32>
    %120 = math.exp %119 : vector<2x96xf32>
    %cst_37 = arith.constant 1.000000e+00 : f32
    %121 = vector.broadcast %cst_37 : f32 to vector<2x96xf32>
    %122 = arith.addf %121, %120 : vector<2x96xf32>
    %123 = arith.divf %121, %122 : vector<2x96xf32>
    %124 = vector.extract_strided_slice %117 {offsets = [0, 96], sizes = [2, 32], strides = [1, 1]} : vector<2x128xf32> to vector<2x32xf32>
    %125 = math.tanh %124 : vector<2x32xf32>
    %126 = vector.extract_strided_slice %123 {offsets = [0, 0], sizes = [2, 32], strides = [1, 1]} : vector<2x96xf32> to vector<2x32xf32>
    %127 = vector.extract_strided_slice %123 {offsets = [0, 32], sizes = [2, 32], strides = [1, 1]} : vector<2x96xf32> to vector<2x32xf32>
    %128 = vector.extract_strided_slice %123 {offsets = [0, 64], sizes = [2, 32], strides = [1, 1]} : vector<2x96xf32> to vector<2x32xf32>
    %129 = arith.mulf %127, %92 : vector<2x32xf32>
    %130 = arith.mulf %126, %125 : vector<2x32xf32>
    %131 = arith.addf %129, %130 : vector<2x32xf32>
    %132 = math.tanh %131 : vector<2x32xf32>
    %133 = arith.mulf %128, %132 : vector<2x32xf32>
    %c6 = arith.constant 6 : index
    %c0_38 = arith.constant 0 : index
    %134 = vector.load %arg10[%c6, %c0_38] : memref<16x256xf32, #tpu.memory_space<vmem>>, vector<2x256xf32>
    %cst_39 = arith.constant dense<0.000000e+00> : vector<2x256xf32>
    %135 = tpu.matmul %113, %0, %cst_39 {dimension_numbers = #tpu.dot_dimension_numbers<[1], [0], [0], [1], [0, 0, 1, 1], [], []>} : vector<2x64xf32>, vector<64x256xf32>, vector<2x256xf32> -> vector<2x256xf32>
    %136 = arith.addf %134, %135 : vector<2x256xf32>
    %137 = vector.extract_strided_slice %136 {offsets = [0, 0], sizes = [2, 192], strides = [1, 1]} : vector<2x256xf32> to vector<2x192xf32>
    %138 = arith.negf %137 : vector<2x192xf32>
    %139 = math.exp %138 : vector<2x192xf32>
    %cst_40 = arith.constant 1.000000e+00 : f32
    %140 = vector.broadcast %cst_40 : f32 to vector<2x192xf32>
    %141 = arith.addf %140, %139 : vector<2x192xf32>
    %142 = arith.divf %140, %141 : vector<2x192xf32>
    %143 = vector.extract_strided_slice %136 {offsets = [0, 192], sizes = [2, 64], strides = [1, 1]} : vector<2x256xf32> to vector<2x64xf32>
    %144 = math.tanh %143 : vector<2x64xf32>
    %145 = vector.extract_strided_slice %142 {offsets = [0, 0], sizes = [2, 64], strides = [1, 1]} : vector<2x192xf32> to vector<2x64xf32>
    %146 = vector.extract_strided_slice %142 {offsets = [0, 64], sizes = [2, 64], strides = [1, 1]} : vector<2x192xf32> to vector<2x64xf32>
    %147 = vector.extract_strided_slice %142 {offsets = [0, 128], sizes = [2, 64], strides = [1, 1]} : vector<2x192xf32> to vector<2x64xf32>
    %148 = arith.mulf %146, %111 : vector<2x64xf32>
    %149 = arith.mulf %145, %144 : vector<2x64xf32>
    %150 = arith.addf %148, %149 : vector<2x64xf32>
    %151 = math.tanh %150 : vector<2x64xf32>
    %152 = arith.mulf %147, %151 : vector<2x64xf32>
    %cst_41 = arith.constant dense<0.000000e+00> : vector<2x128xf32>
    %153 = tpu.matmul %133, %2, %cst_41 {dimension_numbers = #tpu.dot_dimension_numbers<[1], [0], [0], [1], [0, 0, 1, 1], [], []>} : vector<2x32xf32>, vector<32x128xf32>, vector<2x128xf32> -> vector<2x128xf32>
    %cst_42 = arith.constant dense<0.000000e+00> : vector<2x128xf32>
    %154 = tpu.matmul %152, %1, %cst_42 {dimension_numbers = #tpu.dot_dimension_numbers<[1], [0], [0], [1], [0, 0, 1, 1], [], []>} : vector<2x64xf32>, vector<64x128xf32>, vector<2x128xf32> -> vector<2x128xf32>
    %155 = arith.addf %153, %154 : vector<2x128xf32>
    %156 = arith.addf %155, %12 : vector<2x128xf32>
    %157 = vector.extract_strided_slice %156 {offsets = [0, 0], sizes = [2, 96], strides = [1, 1]} : vector<2x128xf32> to vector<2x96xf32>
    %158 = arith.negf %157 : vector<2x96xf32>
    %159 = math.exp %158 : vector<2x96xf32>
    %cst_43 = arith.constant 1.000000e+00 : f32
    %160 = vector.broadcast %cst_43 : f32 to vector<2x96xf32>
    %161 = arith.addf %160, %159 : vector<2x96xf32>
    %162 = arith.divf %160, %161 : vector<2x96xf32>
    %163 = vector.extract_strided_slice %156 {offsets = [0, 96], sizes = [2, 32], strides = [1, 1]} : vector<2x128xf32> to vector<2x32xf32>
    %164 = math.tanh %163 : vector<2x32xf32>
    %165 = vector.extract_strided_slice %162 {offsets = [0, 0], sizes = [2, 32], strides = [1, 1]} : vector<2x96xf32> to vector<2x32xf32>
    %166 = vector.extract_strided_slice %162 {offsets = [0, 32], sizes = [2, 32], strides = [1, 1]} : vector<2x96xf32> to vector<2x32xf32>
    %167 = vector.extract_strided_slice %162 {offsets = [0, 64], sizes = [2, 32], strides = [1, 1]} : vector<2x96xf32> to vector<2x32xf32>
    %168 = arith.mulf %166, %131 : vector<2x32xf32>
    %169 = arith.mulf %165, %164 : vector<2x32xf32>
    %170 = arith.addf %168, %169 : vector<2x32xf32>
    %171 = math.tanh %170 : vector<2x32xf32>
    %172 = arith.mulf %167, %171 : vector<2x32xf32>
    %c8 = arith.constant 8 : index
    %c0_44 = arith.constant 0 : index
    %173 = vector.load %arg10[%c8, %c0_44] : memref<16x256xf32, #tpu.memory_space<vmem>>, vector<2x256xf32>
    %cst_45 = arith.constant dense<0.000000e+00> : vector<2x256xf32>
    %174 = tpu.matmul %152, %0, %cst_45 {dimension_numbers = #tpu.dot_dimension_numbers<[1], [0], [0], [1], [0, 0, 1, 1], [], []>} : vector<2x64xf32>, vector<64x256xf32>, vector<2x256xf32> -> vector<2x256xf32>
    %175 = arith.addf %173, %174 : vector<2x256xf32>
    %176 = vector.extract_strided_slice %175 {offsets = [0, 0], sizes = [2, 192], strides = [1, 1]} : vector<2x256xf32> to vector<2x192xf32>
    %177 = arith.negf %176 : vector<2x192xf32>
    %178 = math.exp %177 : vector<2x192xf32>
    %cst_46 = arith.constant 1.000000e+00 : f32
    %179 = vector.broadcast %cst_46 : f32 to vector<2x192xf32>
    %180 = arith.addf %179, %178 : vector<2x192xf32>
    %181 = arith.divf %179, %180 : vector<2x192xf32>
    %182 = vector.extract_strided_slice %175 {offsets = [0, 192], sizes = [2, 64], strides = [1, 1]} : vector<2x256xf32> to vector<2x64xf32>
    %183 = math.tanh %182 : vector<2x64xf32>
    %184 = vector.extract_strided_slice %181 {offsets = [0, 0], sizes = [2, 64], strides = [1, 1]} : vector<2x192xf32> to vector<2x64xf32>
    %185 = vector.extract_strided_slice %181 {offsets = [0, 64], sizes = [2, 64], strides = [1, 1]} : vector<2x192xf32> to vector<2x64xf32>
    %186 = vector.extract_strided_slice %181 {offsets = [0, 128], sizes = [2, 64], strides = [1, 1]} : vector<2x192xf32> to vector<2x64xf32>
    %187 = arith.mulf %185, %150 : vector<2x64xf32>
    %188 = arith.mulf %184, %183 : vector<2x64xf32>
    %189 = arith.addf %187, %188 : vector<2x64xf32>
    %190 = math.tanh %189 : vector<2x64xf32>
    %191 = arith.mulf %186, %190 : vector<2x64xf32>
    %cst_47 = arith.constant dense<0.000000e+00> : vector<2x128xf32>
    %192 = tpu.matmul %172, %2, %cst_47 {dimension_numbers = #tpu.dot_dimension_numbers<[1], [0], [0], [1], [0, 0, 1, 1], [], []>} : vector<2x32xf32>, vector<32x128xf32>, vector<2x128xf32> -> vector<2x128xf32>
    %cst_48 = arith.constant dense<0.000000e+00> : vector<2x128xf32>
    %193 = tpu.matmul %191, %1, %cst_48 {dimension_numbers = #tpu.dot_dimension_numbers<[1], [0], [0], [1], [0, 0, 1, 1], [], []>} : vector<2x64xf32>, vector<64x128xf32>, vector<2x128xf32> -> vector<2x128xf32>
    %194 = arith.addf %192, %193 : vector<2x128xf32>
    %195 = arith.addf %194, %12 : vector<2x128xf32>
    %196 = vector.extract_strided_slice %195 {offsets = [0, 0], sizes = [2, 96], strides = [1, 1]} : vector<2x128xf32> to vector<2x96xf32>
    %197 = arith.negf %196 : vector<2x96xf32>
    %198 = math.exp %197 : vector<2x96xf32>
    %cst_49 = arith.constant 1.000000e+00 : f32
    %199 = vector.broadcast %cst_49 : f32 to vector<2x96xf32>
    %200 = arith.addf %199, %198 : vector<2x96xf32>
    %201 = arith.divf %199, %200 : vector<2x96xf32>
    %202 = vector.extract_strided_slice %195 {offsets = [0, 96], sizes = [2, 32], strides = [1, 1]} : vector<2x128xf32> to vector<2x32xf32>
    %203 = math.tanh %202 : vector<2x32xf32>
    %204 = vector.extract_strided_slice %201 {offsets = [0, 0], sizes = [2, 32], strides = [1, 1]} : vector<2x96xf32> to vector<2x32xf32>
    %205 = vector.extract_strided_slice %201 {offsets = [0, 32], sizes = [2, 32], strides = [1, 1]} : vector<2x96xf32> to vector<2x32xf32>
    %206 = vector.extract_strided_slice %201 {offsets = [0, 64], sizes = [2, 32], strides = [1, 1]} : vector<2x96xf32> to vector<2x32xf32>
    %207 = arith.mulf %205, %170 : vector<2x32xf32>
    %208 = arith.mulf %204, %203 : vector<2x32xf32>
    %209 = arith.addf %207, %208 : vector<2x32xf32>
    %210 = math.tanh %209 : vector<2x32xf32>
    %211 = arith.mulf %206, %210 : vector<2x32xf32>
    %c10 = arith.constant 10 : index
    %c0_50 = arith.constant 0 : index
    %212 = vector.load %arg10[%c10, %c0_50] : memref<16x256xf32, #tpu.memory_space<vmem>>, vector<2x256xf32>
    %cst_51 = arith.constant dense<0.000000e+00> : vector<2x256xf32>
    %213 = tpu.matmul %191, %0, %cst_51 {dimension_numbers = #tpu.dot_dimension_numbers<[1], [0], [0], [1], [0, 0, 1, 1], [], []>} : vector<2x64xf32>, vector<64x256xf32>, vector<2x256xf32> -> vector<2x256xf32>
    %214 = arith.addf %212, %213 : vector<2x256xf32>
    %215 = vector.extract_strided_slice %214 {offsets = [0, 0], sizes = [2, 192], strides = [1, 1]} : vector<2x256xf32> to vector<2x192xf32>
    %216 = arith.negf %215 : vector<2x192xf32>
    %217 = math.exp %216 : vector<2x192xf32>
    %cst_52 = arith.constant 1.000000e+00 : f32
    %218 = vector.broadcast %cst_52 : f32 to vector<2x192xf32>
    %219 = arith.addf %218, %217 : vector<2x192xf32>
    %220 = arith.divf %218, %219 : vector<2x192xf32>
    %221 = vector.extract_strided_slice %214 {offsets = [0, 192], sizes = [2, 64], strides = [1, 1]} : vector<2x256xf32> to vector<2x64xf32>
    %222 = math.tanh %221 : vector<2x64xf32>
    %223 = vector.extract_strided_slice %220 {offsets = [0, 0], sizes = [2, 64], strides = [1, 1]} : vector<2x192xf32> to vector<2x64xf32>
    %224 = vector.extract_strided_slice %220 {offsets = [0, 64], sizes = [2, 64], strides = [1, 1]} : vector<2x192xf32> to vector<2x64xf32>
    %225 = vector.extract_strided_slice %220 {offsets = [0, 128], sizes = [2, 64], strides = [1, 1]} : vector<2x192xf32> to vector<2x64xf32>
    %226 = arith.mulf %224, %189 : vector<2x64xf32>
    %227 = arith.mulf %223, %222 : vector<2x64xf32>
    %228 = arith.addf %226, %227 : vector<2x64xf32>
    %229 = math.tanh %228 : vector<2x64xf32>
    %230 = arith.mulf %225, %229 : vector<2x64xf32>
    %cst_53 = arith.constant dense<0.000000e+00> : vector<2x128xf32>
    %231 = tpu.matmul %211, %2, %cst_53 {dimension_numbers = #tpu.dot_dimension_numbers<[1], [0], [0], [1], [0, 0, 1, 1], [], []>} : vector<2x32xf32>, vector<32x128xf32>, vector<2x128xf32> -> vector<2x128xf32>
    %cst_54 = arith.constant dense<0.000000e+00> : vector<2x128xf32>
    %232 = tpu.matmul %230, %1, %cst_54 {dimension_numbers = #tpu.dot_dimension_numbers<[1], [0], [0], [1], [0, 0, 1, 1], [], []>} : vector<2x64xf32>, vector<64x128xf32>, vector<2x128xf32> -> vector<2x128xf32>
    %233 = arith.addf %231, %232 : vector<2x128xf32>
    %234 = arith.addf %233, %12 : vector<2x128xf32>
    %235 = vector.extract_strided_slice %234 {offsets = [0, 0], sizes = [2, 96], strides = [1, 1]} : vector<2x128xf32> to vector<2x96xf32>
    %236 = arith.negf %235 : vector<2x96xf32>
    %237 = math.exp %236 : vector<2x96xf32>
    %cst_55 = arith.constant 1.000000e+00 : f32
    %238 = vector.broadcast %cst_55 : f32 to vector<2x96xf32>
    %239 = arith.addf %238, %237 : vector<2x96xf32>
    %240 = arith.divf %238, %239 : vector<2x96xf32>
    %241 = vector.extract_strided_slice %234 {offsets = [0, 96], sizes = [2, 32], strides = [1, 1]} : vector<2x128xf32> to vector<2x32xf32>
    %242 = math.tanh %241 : vector<2x32xf32>
    %243 = vector.extract_strided_slice %240 {offsets = [0, 0], sizes = [2, 32], strides = [1, 1]} : vector<2x96xf32> to vector<2x32xf32>
    %244 = vector.extract_strided_slice %240 {offsets = [0, 32], sizes = [2, 32], strides = [1, 1]} : vector<2x96xf32> to vector<2x32xf32>
    %245 = vector.extract_strided_slice %240 {offsets = [0, 64], sizes = [2, 32], strides = [1, 1]} : vector<2x96xf32> to vector<2x32xf32>
    %246 = arith.mulf %244, %209 : vector<2x32xf32>
    %247 = arith.mulf %243, %242 : vector<2x32xf32>
    %248 = arith.addf %246, %247 : vector<2x32xf32>
    %249 = math.tanh %248 : vector<2x32xf32>
    %250 = arith.mulf %245, %249 : vector<2x32xf32>
    %c12 = arith.constant 12 : index
    %c0_56 = arith.constant 0 : index
    %251 = vector.load %arg10[%c12, %c0_56] : memref<16x256xf32, #tpu.memory_space<vmem>>, vector<2x256xf32>
    %cst_57 = arith.constant dense<0.000000e+00> : vector<2x256xf32>
    %252 = tpu.matmul %230, %0, %cst_57 {dimension_numbers = #tpu.dot_dimension_numbers<[1], [0], [0], [1], [0, 0, 1, 1], [], []>} : vector<2x64xf32>, vector<64x256xf32>, vector<2x256xf32> -> vector<2x256xf32>
    %253 = arith.addf %251, %252 : vector<2x256xf32>
    %254 = vector.extract_strided_slice %253 {offsets = [0, 0], sizes = [2, 192], strides = [1, 1]} : vector<2x256xf32> to vector<2x192xf32>
    %255 = arith.negf %254 : vector<2x192xf32>
    %256 = math.exp %255 : vector<2x192xf32>
    %cst_58 = arith.constant 1.000000e+00 : f32
    %257 = vector.broadcast %cst_58 : f32 to vector<2x192xf32>
    %258 = arith.addf %257, %256 : vector<2x192xf32>
    %259 = arith.divf %257, %258 : vector<2x192xf32>
    %260 = vector.extract_strided_slice %253 {offsets = [0, 192], sizes = [2, 64], strides = [1, 1]} : vector<2x256xf32> to vector<2x64xf32>
    %261 = math.tanh %260 : vector<2x64xf32>
    %262 = vector.extract_strided_slice %259 {offsets = [0, 0], sizes = [2, 64], strides = [1, 1]} : vector<2x192xf32> to vector<2x64xf32>
    %263 = vector.extract_strided_slice %259 {offsets = [0, 64], sizes = [2, 64], strides = [1, 1]} : vector<2x192xf32> to vector<2x64xf32>
    %264 = vector.extract_strided_slice %259 {offsets = [0, 128], sizes = [2, 64], strides = [1, 1]} : vector<2x192xf32> to vector<2x64xf32>
    %265 = arith.mulf %263, %228 : vector<2x64xf32>
    %266 = arith.mulf %262, %261 : vector<2x64xf32>
    %267 = arith.addf %265, %266 : vector<2x64xf32>
    %268 = math.tanh %267 : vector<2x64xf32>
    %269 = arith.mulf %264, %268 : vector<2x64xf32>
    %cst_59 = arith.constant dense<0.000000e+00> : vector<2x128xf32>
    %270 = tpu.matmul %250, %2, %cst_59 {dimension_numbers = #tpu.dot_dimension_numbers<[1], [0], [0], [1], [0, 0, 1, 1], [], []>} : vector<2x32xf32>, vector<32x128xf32>, vector<2x128xf32> -> vector<2x128xf32>
    %cst_60 = arith.constant dense<0.000000e+00> : vector<2x128xf32>
    %271 = tpu.matmul %269, %1, %cst_60 {dimension_numbers = #tpu.dot_dimension_numbers<[1], [0], [0], [1], [0, 0, 1, 1], [], []>} : vector<2x64xf32>, vector<64x128xf32>, vector<2x128xf32> -> vector<2x128xf32>
    %272 = arith.addf %270, %271 : vector<2x128xf32>
    %273 = arith.addf %272, %12 : vector<2x128xf32>
    %274 = vector.extract_strided_slice %273 {offsets = [0, 0], sizes = [2, 96], strides = [1, 1]} : vector<2x128xf32> to vector<2x96xf32>
    %275 = arith.negf %274 : vector<2x96xf32>
    %276 = math.exp %275 : vector<2x96xf32>
    %cst_61 = arith.constant 1.000000e+00 : f32
    %277 = vector.broadcast %cst_61 : f32 to vector<2x96xf32>
    %278 = arith.addf %277, %276 : vector<2x96xf32>
    %279 = arith.divf %277, %278 : vector<2x96xf32>
    %280 = vector.extract_strided_slice %273 {offsets = [0, 96], sizes = [2, 32], strides = [1, 1]} : vector<2x128xf32> to vector<2x32xf32>
    %281 = math.tanh %280 : vector<2x32xf32>
    %282 = vector.extract_strided_slice %279 {offsets = [0, 0], sizes = [2, 32], strides = [1, 1]} : vector<2x96xf32> to vector<2x32xf32>
    %283 = vector.extract_strided_slice %279 {offsets = [0, 32], sizes = [2, 32], strides = [1, 1]} : vector<2x96xf32> to vector<2x32xf32>
    %284 = vector.extract_strided_slice %279 {offsets = [0, 64], sizes = [2, 32], strides = [1, 1]} : vector<2x96xf32> to vector<2x32xf32>
    %285 = arith.mulf %283, %248 : vector<2x32xf32>
    %286 = arith.mulf %282, %281 : vector<2x32xf32>
    %287 = arith.addf %285, %286 : vector<2x32xf32>
    %288 = math.tanh %287 : vector<2x32xf32>
    %289 = arith.mulf %284, %288 : vector<2x32xf32>
    %c14 = arith.constant 14 : index
    %c0_62 = arith.constant 0 : index
    %290 = vector.load %arg10[%c14, %c0_62] : memref<16x256xf32, #tpu.memory_space<vmem>>, vector<2x256xf32>
    %cst_63 = arith.constant dense<0.000000e+00> : vector<2x256xf32>
    %291 = tpu.matmul %269, %0, %cst_63 {dimension_numbers = #tpu.dot_dimension_numbers<[1], [0], [0], [1], [0, 0, 1, 1], [], []>} : vector<2x64xf32>, vector<64x256xf32>, vector<2x256xf32> -> vector<2x256xf32>
    %292 = arith.addf %290, %291 : vector<2x256xf32>
    %293 = vector.extract_strided_slice %292 {offsets = [0, 0], sizes = [2, 192], strides = [1, 1]} : vector<2x256xf32> to vector<2x192xf32>
    %294 = arith.negf %293 : vector<2x192xf32>
    %295 = math.exp %294 : vector<2x192xf32>
    %cst_64 = arith.constant 1.000000e+00 : f32
    %296 = vector.broadcast %cst_64 : f32 to vector<2x192xf32>
    %297 = arith.addf %296, %295 : vector<2x192xf32>
    %298 = arith.divf %296, %297 : vector<2x192xf32>
    %299 = vector.extract_strided_slice %292 {offsets = [0, 192], sizes = [2, 64], strides = [1, 1]} : vector<2x256xf32> to vector<2x64xf32>
    %300 = math.tanh %299 : vector<2x64xf32>
    %301 = vector.extract_strided_slice %298 {offsets = [0, 0], sizes = [2, 64], strides = [1, 1]} : vector<2x192xf32> to vector<2x64xf32>
    %302 = vector.extract_strided_slice %298 {offsets = [0, 64], sizes = [2, 64], strides = [1, 1]} : vector<2x192xf32> to vector<2x64xf32>
    %303 = vector.extract_strided_slice %298 {offsets = [0, 128], sizes = [2, 64], strides = [1, 1]} : vector<2x192xf32> to vector<2x64xf32>
    %304 = arith.mulf %302, %267 : vector<2x64xf32>
    %305 = arith.mulf %301, %300 : vector<2x64xf32>
    %306 = arith.addf %304, %305 : vector<2x64xf32>
    %307 = math.tanh %306 : vector<2x64xf32>
    %308 = arith.mulf %303, %307 : vector<2x64xf32>
    %cst_65 = arith.constant dense<0.000000e+00> : vector<2x128xf32>
    %309 = tpu.matmul %289, %2, %cst_65 {dimension_numbers = #tpu.dot_dimension_numbers<[1], [0], [0], [1], [0, 0, 1, 1], [], []>} : vector<2x32xf32>, vector<32x128xf32>, vector<2x128xf32> -> vector<2x128xf32>
    %cst_66 = arith.constant dense<0.000000e+00> : vector<2x128xf32>
    %310 = tpu.matmul %308, %1, %cst_66 {dimension_numbers = #tpu.dot_dimension_numbers<[1], [0], [0], [1], [0, 0, 1, 1], [], []>} : vector<2x64xf32>, vector<64x128xf32>, vector<2x128xf32> -> vector<2x128xf32>
    %311 = arith.addf %309, %310 : vector<2x128xf32>
    %312 = arith.addf %311, %12 : vector<2x128xf32>
    %313 = vector.extract_strided_slice %312 {offsets = [0, 0], sizes = [2, 96], strides = [1, 1]} : vector<2x128xf32> to vector<2x96xf32>
    %314 = arith.negf %313 : vector<2x96xf32>
    %315 = math.exp %314 : vector<2x96xf32>
    %cst_67 = arith.constant 1.000000e+00 : f32
    %316 = vector.broadcast %cst_67 : f32 to vector<2x96xf32>
    %317 = arith.addf %316, %315 : vector<2x96xf32>
    %318 = arith.divf %316, %317 : vector<2x96xf32>
    %319 = vector.extract_strided_slice %312 {offsets = [0, 96], sizes = [2, 32], strides = [1, 1]} : vector<2x128xf32> to vector<2x32xf32>
    %320 = math.tanh %319 : vector<2x32xf32>
    %321 = vector.extract_strided_slice %318 {offsets = [0, 0], sizes = [2, 32], strides = [1, 1]} : vector<2x96xf32> to vector<2x32xf32>
    %322 = vector.extract_strided_slice %318 {offsets = [0, 32], sizes = [2, 32], strides = [1, 1]} : vector<2x96xf32> to vector<2x32xf32>
    %323 = vector.extract_strided_slice %318 {offsets = [0, 64], sizes = [2, 32], strides = [1, 1]} : vector<2x96xf32> to vector<2x32xf32>
    %324 = arith.mulf %322, %287 : vector<2x32xf32>
    %325 = arith.mulf %321, %320 : vector<2x32xf32>
    %326 = arith.addf %324, %325 : vector<2x32xf32>
    %327 = math.tanh %326 : vector<2x32xf32>
    %328 = arith.mulf %323, %327 : vector<2x32xf32>
    %c0_68 = arith.constant 0 : index
    %c0_69 = arith.constant 0 : index
    %329 = vector.load %arg7[%c0_68, %c0_69] : memref<1x32xf32, #tpu.memory_space<vmem>>, vector<1x32xf32>
    %330 = vector.broadcast %329 : vector<1x32xf32> to vector<2x32xf32>
    %331 = arith.mulf %328, %330 : vector<2x32xf32>
    %cst_70 = arith.constant dense<0.000000e+00> : vector<2xf32>
    %332 = vector.multi_reduction <add>, %331, %cst_70 [1] : vector<2x32xf32> to vector<2xf32>
    %333 = vector.shape_cast %332 : vector<2xf32> to vector<2x1xf32>
    %c0_71 = arith.constant 0 : index
    %c0_72 = arith.constant 0 : index
    %334 = vector.load %arg8[%c0_71, %c0_72] : memref<1x1xf32, #tpu.memory_space<vmem>>, vector<1x1xf32>
    %335 = vector.broadcast %334 : vector<1x1xf32> to vector<2x1xf32>
    %336 = arith.addf %333, %335 : vector<2x1xf32>
    %c0_73 = arith.constant 0 : index
    %c0_74 = arith.constant 0 : index
    %337 = vector.load %arg9[%c0_73, %c0_74] : memref<2x1xf32, #tpu.memory_space<vmem>>, vector<2x1xf32>
    tpu.vector_store %arg9[%c0_73, %c0_74], %336 {strides = array<i32>} : memref<2x1xf32, #tpu.memory_space<vmem>>, vector<2x1xf32>,
    return
  }
}

</mosaic_0001>

<llo_original>
// kernel: lstm_classifier_forward.1
$region0: #{lstm_classifier_forward.1}
  #allocation0 [shape = 'u32[]', space=smem, size = 0x4, offset = 0x4, fixed_abs, tag = 'smem constant byte address 0x4 - core index']
  #allocation1 [shape = 'u32[144,128]{1,0:T(1,128)}', space=vmem, size = 0x12000, scoped, tag = 'internal scratch']
  #allocation2 [shape = 'f32[16,256]{1,0:T(8,128)}', space=vmem, size = 0x4000, scoped, tag = 'scratch operand']
  #allocation3 [shape = 'f32[1,1]{1,0:T(1,128)S(1)}', space=vmem, size = 0x200, scoped, tag = 'scoped memory for lstm_classifier_forward.1']
  %s0 = inlined_call_operand.vmem [shape: f32[16,8], index: 0, kind: input, shape index: {}]
  %s1 = inlined_call_operand.vmem [shape: f32[8,256], index: 1, kind: input, shape index: {}]
  %s2 = inlined_call_operand.vmem [shape: f32[64,256], index: 2, kind: input, shape index: {}]
  %s3 = inlined_call_operand.vmem [shape: f32[1,256], index: 3, kind: input, shape index: {}]
  %s4 = inlined_call_operand.vmem [shape: f32[64,128], index: 4, kind: input, shape index: {}]
  %s5 = inlined_call_operand.vmem [shape: f32[32,128], index: 5, kind: input, shape index: {}]
  %s6 = inlined_call_operand.vmem [shape: f32[1,128], index: 6, kind: input, shape index: {}]
  %s7 = inlined_call_operand.vmem [shape: f32[1,32], index: 7, kind: input, shape index: {}]
  %s8 = inlined_call_operand.<no memory space> [shape: f32[1,1], index: 8, kind: input, shape index: {}]
  %s9 = inlined_call_operand.vmem [shape: f32[2,1], index: 9, kind: output, shape index: {}]
  %s10 = sld [smem:[#allocation0]]
  $region46: #{lstm_classifier_forward.1} parent=0
    _
  %s12 = ssub.s32 1, %s10
  %s13 = scalar_select 0, %s12, %s10
  %v14 = vstv %s8
  %15 = vst [vmem:[#allocation3] sm:$0x1] %v14
  // Predicated region
  $region2: #{lstm_classifier_forward.1} parent=0 // pred_check
    _
  $region3: #{lstm_classifier_forward.1} parent=0 // pred_check_branch
    %17 = sbr.rel (0) target = $region5
  $region4: #{lstm_classifier_forward.1} parent=0 // pred_region
    _
  $region5: #{lstm_classifier_forward.1} parent=0 // pred_fallthru
    _
  // Predicated region
  $region6: #{lstm_classifier_forward.1} parent=0 // pred_check
    _
  $region7: #{lstm_classifier_forward.1} parent=0 // pred_check_branch
    %19 = sbr.rel (0) target = $region9
  $region8: #{lstm_classifier_forward.1} parent=0 // pred_region
    _
  $region9: #{lstm_classifier_forward.1} parent=0 // pred_fallthru
    _
  // Predicated region
  $region10: #{lstm_classifier_forward.1} parent=0 // pred_check
    _
  $region11: #{lstm_classifier_forward.1} parent=0 // pred_check_branch
    %21 = sbr.rel (0) target = $region13
  $region12: #{lstm_classifier_forward.1} parent=0 // pred_region
    _
  $region13: #{lstm_classifier_forward.1} parent=0 // pred_fallthru
    _
  // Predicated region
  $region14: #{lstm_classifier_forward.1} parent=0 // pred_check
    _
  $region15: #{lstm_classifier_forward.1} parent=0 // pred_check_branch
    %23 = sbr.rel (0) target = $region17
  $region16: #{lstm_classifier_forward.1} parent=0 // pred_region
    _
  $region17: #{lstm_classifier_forward.1} parent=0 // pred_fallthru
    _
  // Predicated region
  $region18: #{lstm_classifier_forward.1} parent=0 // pred_check
    _
  $region19: #{lstm_classifier_forward.1} parent=0 // pred_check_branch
    %25 = sbr.rel (0) target = $region21
  $region20: #{lstm_classifier_forward.1} parent=0 // pred_region
    _
  $region21: #{lstm_classifier_forward.1} parent=0 // pred_fallthru
    _
  // Predicated region
  $region22: #{lstm_classifier_forward.1} parent=0 // pred_check
    _
  $region23: #{lstm_classifier_forward.1} parent=0 // pred_check_branch
    %27 = sbr.rel (0) target = $region25
  $region24: #{lstm_classifier_forward.1} parent=0 // pred_region
    _
  $region25: #{lstm_classifier_forward.1} parent=0 // pred_fallthru
    _
  // Predicated region
  $region26: #{lstm_classifier_forward.1} parent=0 // pred_check
    _
  $region27: #{lstm_classifier_forward.1} parent=0 // pred_check_branch
    %29 = sbr.rel (0) target = $region29
  $region28: #{lstm_classifier_forward.1} parent=0 // pred_region
    _
  $region29: #{lstm_classifier_forward.1} parent=0 // pred_fallthru
    _
  // Predicated region
  $region30: #{lstm_classifier_forward.1} parent=0 // pred_check
    _
  $region31: #{lstm_classifier_forward.1} parent=0 // pred_check_branch
    %31 = sbr.rel (0) target = $region33
  $region32: #{lstm_classifier_forward.1} parent=0 // pred_region
    _
  $region33: #{lstm_classifier_forward.1} parent=0 // pred_fallthru
    _
  // Predicated region
  $region34: #{lstm_classifier_forward.1} parent=0 // pred_check
    _
  $region35: #{lstm_classifier_forward.1} parent=0 // pred_check_branch
    %33 = sbr.rel (0) target = $region37
  $region36: #{lstm_classifier_forward.1} parent=0 // pred_region
    _
  $region37: #{lstm_classifier_forward.1} parent=0 // pred_fallthru
    _
  %v34 = vld [vmem:[%s2] sm:$0xff]
  %v35 = vld [vmem:[%s2 + $0x8] sm:$0xff]
  %v36 = vld [vmem:[%s2 + $0x10] sm:$0xff]
  %v37 = vld [vmem:[%s2 + $0x18] sm:$0xff]
  %v38 = vld [vmem:[%s2 + $0x20] sm:$0xff]
  %v39 = vld [vmem:[%s2 + $0x28] sm:$0xff]
  %v40 = vld [vmem:[%s2 + $0x30] sm:$0xff]
  %v41 = vld [vmem:[%s2 + $0x38] sm:$0xff]
  %v42 = vld [vmem:[%s2 + $0x40] sm:$0xff]
  %v43 = vld [vmem:[%s2 + $0x48] sm:$0xff]
  %v44 = vld [vmem:[%s2 + $0x50] sm:$0xff]
  %v45 = vld [vmem:[%s2 + $0x58] sm:$0xff]
  %v46 = vld [vmem:[%s2 + $0x60] sm:$0xff]
  %v47 = vld [vmem:[%s2 + $0x68] sm:$0xff]
  %v48 = vld [vmem:[%s2 + $0x70] sm:$0xff]
  %v49 = vld [vmem:[%s2 + $0x78] sm:$0xff]
  %v50 = vld [vmem:[%s4] sm:$0xff]
  %v51 = vld [vmem:[%s4 + $0x8] sm:$0xff]
  %v52 = vld [vmem:[%s4 + $0x10] sm:$0xff]
  %v53 = vld [vmem:[%s4 + $0x18] sm:$0xff]
  %v54 = vld [vmem:[%s4 + $0x20] sm:$0xff]
  %v55 = vld [vmem:[%s4 + $0x28] sm:$0xff]
  %v56 = vld [vmem:[%s4 + $0x30] sm:$0xff]
  %v57 = vld [vmem:[%s4 + $0x38] sm:$0xff]
  %v58 = vld [vmem:[%s5] sm:$0xff]
  %v59 = vld [vmem:[%s5 + $0x8] sm:$0xff]
  %v60 = vld [vmem:[%s5 + $0x10] sm:$0xff]
  %v61 = vld [vmem:[%s5 + $0x18] sm:$0xff]
  %v62 = vld [vmem:[%s0] sm:$0xff]
  %v63 = vld [vmem:[%s0 + $0x8] sm:$0xff]
  %v64 = vld [vmem:[%s1] sm:$0xff]
  %v65 = vld [vmem:[%s1 + $0x8] sm:$0xff]
  %v66 = vld [vmem:[%s3] sm:$0x3]
  %v68 = vlaneseq
  %v69 = vshrl.u32 %v68, 7
  %v70 = vsub.s32 0, %v69
  %v71 = vrot.slane %v66, %v70
  %v72 = vlaneseq
  %v73 = vshrl.u32 %v72, 7
  %v74 = vsub.s32 1, %v73
  %v75 = vrot.slane %v66, %v74
  %vm78 = vcmask 64512
  %v80 = vsel %vm78, %v62, 0
  %v83 = vsel %vm78, %v63, 0
  %85 = vmatprep.subr.mxu0 %v65
  %86 = vmatpush1.msra.mxu0 %v64
  %87 = vmatprep.subr.mxu0 0.0
  %88 = vmatpush1.msra.mxu0 0.0
  %89 = vmatprep.subr.mxu0 0.0
  %90 = vmatpush1.msra.mxu0 0.0
  %91 = vmatprep.subr.mxu0 0.0
  %92 = vmatpush1.msra.mxu0 0.0
  %93 = vmatprep.subr.mxu0 0.0
  %94 = vmatpush1.msra.mxu0 0.0
  %95 = vmatprep.subr.mxu0 0.0
  %96 = vmatpush1.msra.mxu0 0.0
  %97 = vmatprep.subr.mxu0 0.0
  %98 = vmatpush1.msra.mxu0 0.0
  %99 = vmatprep.subr.mxu0 0.0
  %100 = vmatpush1.msra.mxu0 0.0
  %101 = vmatprep.subr.mxu0 0.0
  %102 = vmatpush1.msra.mxu0 0.0
  %103 = vmatprep.subr.mxu0 0.0
  %104 = vmatpush1.msra.mxu0 0.0
  %105 = vmatprep.subr.mxu0 0.0
  %106 = vmatpush1.msra.mxu0 0.0
  %107 = vmatprep.subr.mxu0 0.0
  %108 = vmatpush1.msra.mxu0 0.0
  %109 = vmatprep.subr.mxu0 0.0
  %110 = vmatpush1.msra.mxu0 0.0
  %111 = vmatprep.subr.mxu0 0.0
  %112 = vmatpush1.msra.mxu0 0.0
  %113 = vmatprep.subr.mxu0 0.0
  %114 = vmatpush1.msra.mxu0 0.0
  %115 = vmatprep.subr.mxu0 0.0
  %116 = vmatpush1.msra.mxu0 0.0
  %117 = vmatprep.subr.mxu0 0.0
  %118 = vmatpush1.msra.mxu0 0.0
  %119 = vmatprep.subr.mxu0 0.0
  %120 = vmatpush1.msra.mxu0 0.0
  %121 = vmatprep.subr.mxu0 0.0
  %122 = vmatpush1.msra.mxu0 0.0
  %123 = vmatprep.subr.mxu0 0.0
  %124 = vmatpush1.msra.mxu0 0.0
  %125 = vmatprep.subr.mxu0 0.0
  %126 = vmatpush1.msra.mxu0 0.0
  %127 = vmatprep.subr.mxu0 0.0
  %128 = vmatpush1.msra.mxu0 0.0
  %129 = vmatprep.subr.mxu0 0.0
  %130 = vmatpush1.msra.mxu0 0.0
  %131 = vmatprep.subr.mxu0 0.0
  %132 = vmatpush1.msra.mxu0 0.0
  %133 = vmatprep.subr.mxu0 0.0
  %134 = vmatpush1.msra.mxu0 0.0
  %135 = vmatprep.subr.mxu0 0.0
  %136 = vmatpush1.msra.mxu0 0.0
  %137 = vmatprep.subr.mxu0 0.0
  %138 = vmatpush1.msra.mxu0 0.0
  %139 = vmatprep.subr.mxu0 0.0
  %140 = vmatpush1.msra.mxu0 0.0
  %141 = vmatprep.subr.mxu0 0.0
  %142 = vmatpush1.msra.mxu0 0.0
  %143 = vmatprep.subr.mxu0 0.0
  %144 = vmatpush1.msra.mxu0 0.0
  %145 = vmatprep.subr.mxu0 0.0
  %146 = vmatpush1.msra.mxu0 0.0
  %147 = vmatprep.subr.mxu0 0.0
  %148 = vmatpush1.msra.mxu0 0.0
  %149 = vmatprep.mubr.f32.mxu0 0.0
  %150 = vmatmul.mubr.f32.gmra.mrb[0].mxu0 %v80
  %v151 = vpop.f32.mrb[0].mxu0
  %v152 = vadd.f32 %v71, %v151
  %v153 = vpop.f32.mrb[0].mxu0
  %v154 = vadd.f32 %v75, %v153
  %155 = vmatprep.mubr.f32.mxu0 0.0
  %156 = vmatmul.mubr.f32.gmra.mrb[0].mxu0 %v83
  %v157 = vpop.f32.mrb[0].mxu0
  %v158 = vadd.f32 %v71, %v157
  %v159 = vpop.f32.mrb[0].mxu0
  %v160 = vadd.f32 %v75, %v159
  %161 = vdwg.mxu0
  %162 = vst [vmem:[#allocation2] sm:$0xff] %v152
  %163 = vst [vmem:[#allocation2 + $0x8] sm:$0xff] %v154
  %164 = vst [vmem:[#allocation2 + $0x10] sm:$0xff] %v158
  %165 = vst [vmem:[#allocation2 + $0x18] sm:$0xff] %v160
  %v166 = vld [vmem:[%s6] sm:$0x1]
  %v168 = vlaneseq
  %v169 = vshrl.u32 %v168, 7
  %v170 = vsub.s32 0, %v169
  %v171 = vrot.slane %v166, %v170
  %v173 = vld [vmem:[#allocation2] sm:$0x3]
  %v174 = vld [vmem:[#allocation2 + $0x8] sm:$0x3]
  %vm175 = vcmask 523264
  %v177 = vsel %vm175, 0.0, 0
  %179 = vmatprep.subr.mxu0 %v35
  %180 = vmatpush1.msra.mxu0 %v34
  %181 = vmatprep.subr.mxu0 %v37
  %182 = vmatpush1.msra.mxu0 %v36
  %183 = vmatprep.subr.mxu0 %v39
  %184 = vmatpush1.msra.mxu0 %v38
  %185 = vmatprep.subr.mxu0 %v41
  %186 = vmatpush1.msra.mxu0 %v40
  %187 = vmatprep.subr.mxu0 %v43
  %188 = vmatpush1.msra.mxu0 %v42
  %189 = vmatprep.subr.mxu0 %v45
  %190 = vmatpush1.msra.mxu0 %v44
  %191 = vmatprep.subr.mxu0 %v47
  %192 = vmatpush1.msra.mxu0 %v46
  %193 = vmatprep.subr.mxu0 %v49
  %194 = vmatpush1.msra.mxu0 %v48
  %195 = vmatprep.subr.mxu0 0.0
  %196 = vmatpush1.msra.mxu0 0.0
  %197 = vmatprep.subr.mxu0 0.0
  %198 = vmatpush1.msra.mxu0 0.0
  %199 = vmatprep.subr.mxu0 0.0
  %200 = vmatpush1.msra.mxu0 0.0
  %201 = vmatprep.subr.mxu0 0.0
  %202 = vmatpush1.msra.mxu0 0.0
  %203 = vmatprep.subr.mxu0 0.0
  %204 = vmatpush1.msra.mxu0 0.0
  %205 = vmatprep.subr.mxu0 0.0
  %206 = vmatpush1.msra.mxu0 0.0
  %207 = vmatprep.subr.mxu0 0.0
  %208 = vmatpush1.msra.mxu0 0.0
  %209 = vmatprep.subr.mxu0 0.0
  %210 = vmatpush1.msra.mxu0 0.0
  %211 = vmatprep.subr.mxu0 0.0
  %212 = vmatpush1.msra.mxu0 0.0
  %213 = vmatprep.subr.mxu0 0.0
  %214 = vmatpush1.msra.mxu0 0.0
  %215 = vmatprep.subr.mxu0 0.0
  %216 = vmatpush1.msra.mxu0 0.0
  %217 = vmatprep.subr.mxu0 0.0
  %218 = vmatpush1.msra.mxu0 0.0
  %219 = vmatprep.subr.mxu0 0.0
  %220 = vmatpush1.msra.mxu0 0.0
  %221 = vmatprep.subr.mxu0 0.0
  %222 = vmatpush1.msra.mxu0 0.0
  %223 = vmatprep.subr.mxu0 0.0
  %224 = vmatpush1.msra.mxu0 0.0
  %225 = vmatprep.subr.mxu0 0.0
  %226 = vmatpush1.msra.mxu0 0.0
  %227 = vmatprep.subr.mxu0 0.0
  %228 = vmatpush1.msra.mxu0 0.0
  %229 = vmatprep.subr.mxu0 0.0
  %230 = vmatpush1.msra.mxu0 0.0
  %231 = vmatprep.subr.mxu0 0.0
  %232 = vmatpush1.msra.mxu0 0.0
  %233 = vmatprep.subr.mxu0 0.0
  %234 = vmatpush1.msra.mxu0 0.0
  %235 = vmatprep.subr.mxu0 0.0
  %236 = vmatpush1.msra.mxu0 0.0
  %237 = vmatprep.subr.mxu0 0.0
  %238 = vmatpush1.msra.mxu0 0.0
  %239 = vmatprep.subr.mxu0 0.0
  %240 = vmatpush1.msra.mxu0 0.0
  %241 = vmatprep.subr.mxu0 0.0
  %242 = vmatpush1.msra.mxu0 0.0
  %243 = vmatprep.mubr.f32.mxu0 0.0
  %244 = vmatmul.mubr.f32.gmra.mrb[0].mxu0 %v177
  %v245 = vpop.f32.mrb[0].mxu0
  %v246 = vadd.f32 0.0, %v245
  %v247 = vpop.f32.mrb[0].mxu0
  %v248 = vadd.f32 0.0, %v247
  %249 = vdwg.mxu0
  %v250 = vadd.f32 %v173, %v246
  %v251 = vadd.f32 %v174, %v248
  %v252 = vxor.u32 %v250, 2147483648
  %v253 = vxor.u32 %v251, 2147483648
  %v254 = vmul.f32 %v252, 1.442695
  %v255 = vpow.pop %v254
  %v256 = vmul.f32 %v253, 1.442695
  %v257 = vpow.pop %v256
  %v258 = vadd.f32 %v255, 1.0
  %v259 = vadd.f32 %v257, 1.0
  %v260 = vrcp.pop %v258
  %v261 = vmul.f32 1.0, %v260
  %v262 = vrcp.pop %v259
  %v263 = vmul.f32 1.0, %v262
  %v264 = vtanh.pop %v251
  %v265 = vmul.f32 %v261, 0.0
  %267 = vrot.lane.b32.xlu0 %v264, 64
  %v268 = vpop.permute.xlu0 %267
  %v270 = vmul.f32 %v261, %v268
  %272 = vrot.lane.b32.xlu0 %v270, 64
  %v273 = vpop.permute.xlu0 %272
  %v275 = vadd.f32 %v265, %v273
  %v276 = vtanh.pop %v275
  %278 = vrot.lane.b32.xlu0 %v276, 64
  %v279 = vpop.permute.xlu0 %278
  %v281 = vmul.f32 %v263, %v279
  %v283 = vsel %vm175, %v281, 0
  %285 = vmatprep.subr.mxu0 0.0
  %286 = vmatpush1.msra.mxu0 %v50
  %287 = vmatprep.subr.mxu0 0.0
  %288 = vmatpush1.msra.mxu0 %v51
  %289 = vmatprep.subr.mxu0 0.0
  %290 = vmatpush1.msra.mxu0 %v52
  %291 = vmatprep.subr.mxu0 0.0
  %292 = vmatpush1.msra.mxu0 %v53
  %293 = vmatprep.subr.mxu0 0.0
  %294 = vmatpush1.msra.mxu0 %v54
  %295 = vmatprep.subr.mxu0 0.0
  %296 = vmatpush1.msra.mxu0 %v55
  %297 = vmatprep.subr.mxu0 0.0
  %298 = vmatpush1.msra.mxu0 %v56
  %299 = vmatprep.subr.mxu0 0.0
  %300 = vmatpush1.msra.mxu0 %v57
  %301 = vmatprep.subr.mxu0 0.0
  %302 = vmatpush1.msra.mxu0 0.0
  %303 = vmatprep.subr.mxu0 0.0
  %304 = vmatpush1.msra.mxu0 0.0
  %305 = vmatprep.subr.mxu0 0.0
  %306 = vmatpush1.msra.mxu0 0.0
  %307 = vmatprep.subr.mxu0 0.0
  %308 = vmatpush1.msra.mxu0 0.0
  %309 = vmatprep.subr.mxu0 0.0
  %310 = vmatpush1.msra.mxu0 0.0
  %311 = vmatprep.subr.mxu0 0.0
  %312 = vmatpush1.msra.mxu0 0.0
  %313 = vmatprep.subr.mxu0 0.0
  %314 = vmatpush1.msra.mxu0 0.0
  %315 = vmatprep.subr.mxu0 0.0
  %316 = vmatpush1.msra.mxu0 0.0
  %317 = vmatprep.subr.mxu0 0.0
  %318 = vmatpush1.msra.mxu0 0.0
  %319 = vmatprep.subr.mxu0 0.0
  %320 = vmatpush1.msra.mxu0 0.0
  %321 = vmatprep.subr.mxu0 0.0
  %322 = vmatpush1.msra.mxu0 0.0
  %323 = vmatprep.subr.mxu0 0.0
  %324 = vmatpush1.msra.mxu0 0.0
  %325 = vmatprep.subr.mxu0 0.0
  %326 = vmatpush1.msra.mxu0 0.0
  %327 = vmatprep.subr.mxu0 0.0
  %328 = vmatpush1.msra.mxu0 0.0
  %329 = vmatprep.subr.mxu0 0.0
  %330 = vmatpush1.msra.mxu0 0.0
  %331 = vmatprep.subr.mxu0 0.0
  %332 = vmatpush1.msra.mxu0 0.0
  %333 = vmatprep.subr.mxu0 0.0
  %334 = vmatpush1.msra.mxu0 0.0
  %335 = vmatprep.subr.mxu0 0.0
  %336 = vmatpush1.msra.mxu0 0.0
  %337 = vmatprep.subr.mxu0 0.0
  %338 = vmatpush1.msra.mxu0 0.0
  %339 = vmatprep.subr.mxu0 0.0
  %340 = vmatpush1.msra.mxu0 0.0
  %341 = vmatprep.subr.mxu0 0.0
  %342 = vmatpush1.msra.mxu0 0.0
  %343 = vmatprep.subr.mxu0 0.0
  %344 = vmatpush1.msra.mxu0 0.0
  %345 = vmatprep.subr.mxu0 0.0
  %346 = vmatpush1.msra.mxu0 0.0
  %347 = vmatprep.subr.mxu0 0.0
  %348 = vmatpush1.msra.mxu0 0.0
  %349 = vmatprep.mubr.f32.mxu0 0.0
  %350 = vmatmul.mubr.f32.gmra.mrb[0].mxu0 %v283
  %v351 = vpop.f32.mrb[0].mxu0
  %v352 = vadd.f32 0.0, %v351
  %v353 = vpop.f32.mrb[0].mxu0
  %354 = vdwg.mxu0
  %vm355 = vcmask 261120
  %v356 = vsel %vm355, 0.0, 0
  %358 = vmatprep.subr.mxu0 0.0
  %359 = vmatpush1.msra.mxu0 %v58
  %360 = vmatprep.subr.mxu0 0.0
  %361 = vmatpush1.msra.mxu0 %v59
  %362 = vmatprep.subr.mxu0 0.0
  %363 = vmatpush1.msra.mxu0 %v60
  %364 = vmatprep.subr.mxu0 0.0
  %365 = vmatpush1.msra.mxu0 %v61
  %366 = vmatprep.subr.mxu0 0.0
  %367 = vmatpush1.msra.mxu0 0.0
  %368 = vmatprep.subr.mxu0 0.0
  %369 = vmatpush1.msra.mxu0 0.0
  %370 = vmatprep.subr.mxu0 0.0
  %371 = vmatpush1.msra.mxu0 0.0
  %372 = vmatprep.subr.mxu0 0.0
  %373 = vmatpush1.msra.mxu0 0.0
  %374 = vmatprep.subr.mxu0 0.0
  %375 = vmatpush1.msra.mxu0 0.0
  %376 = vmatprep.subr.mxu0 0.0
  %377 = vmatpush1.msra.mxu0 0.0
  %378 = vmatprep.subr.mxu0 0.0
  %379 = vmatpush1.msra.mxu0 0.0
  %380 = vmatprep.subr.mxu0 0.0
  %381 = vmatpush1.msra.mxu0 0.0
  %382 = vmatprep.subr.mxu0 0.0
  %383 = vmatpush1.msra.mxu0 0.0
  %384 = vmatprep.subr.mxu0 0.0
  %385 = vmatpush1.msra.mxu0 0.0
  %386 = vmatprep.subr.mxu0 0.0
  %387 = vmatpush1.msra.mxu0 0.0
  %388 = vmatprep.subr.mxu0 0.0
  %389 = vmatpush1.msra.mxu0 0.0
  %390 = vmatprep.subr.mxu0 0.0
  %391 = vmatpush1.msra.mxu0 0.0
  %392 = vmatprep.subr.mxu0 0.0
  %393 = vmatpush1.msra.mxu0 0.0
  %394 = vmatprep.subr.mxu0 0.0
  %395 = vmatpush1.msra.mxu0 0.0
  %396 = vmatprep.subr.mxu0 0.0
  %397 = vmatpush1.msra.mxu0 0.0
  %398 = vmatprep.subr.mxu0 0.0
  %399 = vmatpush1.msra.mxu0 0.0
  %400 = vmatprep.subr.mxu0 0.0
  %401 = vmatpush1.msra.mxu0 0.0
  %402 = vmatprep.subr.mxu0 0.0
  %403 = vmatpush1.msra.mxu0 0.0
  %404 = vmatprep.subr.mxu0 0.0
  %405 = vmatpush1.msra.mxu0 0.0
  %406 = vmatprep.subr.mxu0 0.0
  %407 = vmatpush1.msra.mxu0 0.0
  %408 = vmatprep.subr.mxu0 0.0
  %409 = vmatpush1.msra.mxu0 0.0
  %410 = vmatprep.subr.mxu0 0.0
  %411 = vmatpush1.msra.mxu0 0.0
  %412 = vmatprep.subr.mxu0 0.0
  %413 = vmatpush1.msra.mxu0 0.0
  %414 = vmatprep.subr.mxu0 0.0
  %415 = vmatpush1.msra.mxu0 0.0
  %416 = vmatprep.subr.mxu0 0.0
  %417 = vmatpush1.msra.mxu0 0.0
  %418 = vmatprep.subr.mxu0 0.0
  %419 = vmatpush1.msra.mxu0 0.0
  %420 = vmatprep.subr.mxu0 0.0
  %421 = vmatpush1.msra.mxu0 0.0
  %422 = vmatprep.mubr.f32.mxu0 0.0
  %423 = vmatmul.mubr.f32.gmra.mrb[0].mxu0 %v356
  %v424 = vpop.f32.mrb[0].mxu0
  %v425 = vadd.f32 %v352, %v424
  %v426 = vpop.f32.mrb[0].mxu0
  %427 = vdwg.mxu0
  %v428 = vadd.f32 %v425, %v171
  %v429 = vxor.u32 %v428, 2147483648
  %v430 = vmul.f32 %v429, 1.442695
  %v431 = vpow.pop %v430
  %v432 = vadd.f32 %v431, 1.0
  %v433 = vrcp.pop %v432
  %v434 = vmul.f32 1.0, %v433
  %v435 = vtanh.pop %v428
  %v436 = vmul.f32 %v434, 0.0
  %438 = vrot.lane.b32.xlu0 %v435, 32
  %v439 = vpop.permute.xlu0 %438
  %v441 = vmul.f32 %v434, %v439
  %443 = vrot.lane.b32.xlu0 %v441, 32
  %v444 = vpop.permute.xlu0 %443
  %v446 = vadd.f32 %v436, %v444
  %v447 = vtanh.pop %v446
  %449 = vrot.lane.b32.xlu0 %v447, 32
  %v450 = vpop.permute.xlu0 %449
  %v452 = vmul.f32 %v434, %v450
  %v453 = vld [vmem:[#allocation2] sm:$0xc]
  %v454 = vld [vmem:[#allocation2 + $0x8] sm:$0xc]
  %455 = vmatprep.subr.mxu0 %v35
  %456 = vmatpush1.msra.mxu0 %v34
  %457 = vmatprep.subr.mxu0 %v37
  %458 = vmatpush1.msra.mxu0 %v36
  %459 = vmatprep.subr.mxu0 %v39
  %460 = vmatpush1.msra.mxu0 %v38
  %461 = vmatprep.subr.mxu0 %v41
  %462 = vmatpush1.msra.mxu0 %v40
  %463 = vmatprep.subr.mxu0 %v43
  %464 = vmatpush1.msra.mxu0 %v42
  %465 = vmatprep.subr.mxu0 %v45
  %466 = vmatpush1.msra.mxu0 %v44
  %467 = vmatprep.subr.mxu0 %v47
  %468 = vmatpush1.msra.mxu0 %v46
  %469 = vmatprep.subr.mxu0 %v49
  %470 = vmatpush1.msra.mxu0 %v48
  %471 = vmatprep.subr.mxu0 0.0
  %472 = vmatpush1.msra.mxu0 0.0
  %473 = vmatprep.subr.mxu0 0.0
  %474 = vmatpush1.msra.mxu0 0.0
  %475 = vmatprep.subr.mxu0 0.0
  %476 = vmatpush1.msra.mxu0 0.0
  %477 = vmatprep.subr.mxu0 0.0
  %478 = vmatpush1.msra.mxu0 0.0
  %479 = vmatprep.subr.mxu0 0.0
  %480 = vmatpush1.msra.mxu0 0.0
  %481 = vmatprep.subr.mxu0 0.0
  %482 = vmatpush1.msra.mxu0 0.0
  %483 = vmatprep.subr.mxu0 0.0
  %484 = vmatpush1.msra.mxu0 0.0
  %485 = vmatprep.subr.mxu0 0.0
  %486 = vmatpush1.msra.mxu0 0.0
  %487 = vmatprep.subr.mxu0 0.0
  %488 = vmatpush1.msra.mxu0 0.0
  %489 = vmatprep.subr.mxu0 0.0
  %490 = vmatpush1.msra.mxu0 0.0
  %491 = vmatprep.subr.mxu0 0.0
  %492 = vmatpush1.msra.mxu0 0.0
  %493 = vmatprep.subr.mxu0 0.0
  %494 = vmatpush1.msra.mxu0 0.0
  %495 = vmatprep.subr.mxu0 0.0
  %496 = vmatpush1.msra.mxu0 0.0
  %497 = vmatprep.subr.mxu0 0.0
  %498 = vmatpush1.msra.mxu0 0.0
  %499 = vmatprep.subr.mxu0 0.0
  %500 = vmatpush1.msra.mxu0 0.0
  %501 = vmatprep.subr.mxu0 0.0
  %502 = vmatpush1.msra.mxu0 0.0
  %503 = vmatprep.subr.mxu0 0.0
  %504 = vmatpush1.msra.mxu0 0.0
  %505 = vmatprep.subr.mxu0 0.0
  %506 = vmatpush1.msra.mxu0 0.0
  %507 = vmatprep.subr.mxu0 0.0
  %508 = vmatpush1.msra.mxu0 0.0
  %509 = vmatprep.subr.mxu0 0.0
  %510 = vmatpush1.msra.mxu0 0.0
  %511 = vmatprep.subr.mxu0 0.0
  %512 = vmatpush1.msra.mxu0 0.0
  %513 = vmatprep.subr.mxu0 0.0
  %514 = vmatpush1.msra.mxu0 0.0
  %515 = vmatprep.subr.mxu0 0.0
  %516 = vmatpush1.msra.mxu0 0.0
  %517 = vmatprep.subr.mxu0 0.0
  %518 = vmatpush1.msra.mxu0 0.0
  %519 = vmatprep.mubr.f32.mxu0 0.0
  %520 = vmatmul.mubr.f32.gmra.mrb[0].mxu0 %v283
  %v521 = vpop.f32.mrb[0].mxu0
  %v522 = vadd.f32 0.0, %v521
  %v523 = vpop.f32.mrb[0].mxu0
  %v524 = vadd.f32 0.0, %v523
  %525 = vdwg.mxu0
  %v528 = vrot.slane %v522, 6
  %v529 = vrot.slane %v524, 6
  %v532 = vadd.f32 %v453, %v528
  %v533 = vadd.f32 %v454, %v529
  %v534 = vxor.u32 %v532, 2147483648
  %v535 = vxor.u32 %v533, 2147483648
  %v536 = vmul.f32 %v534, 1.442695
  %v537 = vpow.pop %v536
  %v538 = vmul.f32 %v535, 1.442695
  %v539 = vpow.pop %v538
  %v540 = vadd.f32 %v537, 1.0
  %v541 = vadd.f32 %v539, 1.0
  %v542 = vrcp.pop %v540
  %v543 = vmul.f32 1.0, %v542
  %v544 = vrcp.pop %v541
  %v545 = vmul.f32 1.0, %v544
  %v546 = vtanh.pop %v533
  %v548 = vrot.slane %v275, 6
  %v550 = vmul.f32 %v543, %v548
  %552 = vrot.lane.b32.xlu0 %v546, 64
  %v553 = vpop.permute.xlu0 %552
  %v555 = vmul.f32 %v543, %v553
  %557 = vrot.lane.b32.xlu0 %v555, 64
  %v558 = vpop.permute.xlu0 %557
  %v560 = vadd.f32 %v550, %v558
  %v561 = vtanh.pop %v560
  %563 = vrot.lane.b32.xlu0 %v561, 64
  %v564 = vpop.permute.xlu0 %563
  %v566 = vmul.f32 %v545, %v564
  %v568 = vrot.slane %v566, 2
  %v569 = vsel %vm175, %v568, 0
  %571 = vmatprep.subr.mxu0 0.0
  %572 = vmatpush1.msra.mxu0 %v50
  %573 = vmatprep.subr.mxu0 0.0
  %574 = vmatpush1.msra.mxu0 %v51
  %575 = vmatprep.subr.mxu0 0.0
  %576 = vmatpush1.msra.mxu0 %v52
  %577 = vmatprep.subr.mxu0 0.0
  %578 = vmatpush1.msra.mxu0 %v53
  %579 = vmatprep.subr.mxu0 0.0
  %580 = vmatpush1.msra.mxu0 %v54
  %581 = vmatprep.subr.mxu0 0.0
  %582 = vmatpush1.msra.mxu0 %v55
  %583 = vmatprep.subr.mxu0 0.0
  %584 = vmatpush1.msra.mxu0 %v56
  %585 = vmatprep.subr.mxu0 0.0
  %586 = vmatpush1.msra.mxu0 %v57
  %587 = vmatprep.subr.mxu0 0.0
  %588 = vmatpush1.msra.mxu0 0.0
  %589 = vmatprep.subr.mxu0 0.0
  %590 = vmatpush1.msra.mxu0 0.0
  %591 = vmatprep.subr.mxu0 0.0
  %592 = vmatpush1.msra.mxu0 0.0
  %593 = vmatprep.subr.mxu0 0.0
  %594 = vmatpush1.msra.mxu0 0.0
  %595 = vmatprep.subr.mxu0 0.0
  %596 = vmatpush1.msra.mxu0 0.0
  %597 = vmatprep.subr.mxu0 0.0
  %598 = vmatpush1.msra.mxu0 0.0
  %599 = vmatprep.subr.mxu0 0.0
  %600 = vmatpush1.msra.mxu0 0.0
  %601 = vmatprep.subr.mxu0 0.0
  %602 = vmatpush1.msra.mxu0 0.0
  %603 = vmatprep.subr.mxu0 0.0
  %604 = vmatpush1.msra.mxu0 0.0
  %605 = vmatprep.subr.mxu0 0.0
  %606 = vmatpush1.msra.mxu0 0.0
  %607 = vmatprep.subr.mxu0 0.0
  %608 = vmatpush1.msra.mxu0 0.0
  %609 = vmatprep.subr.mxu0 0.0
  %610 = vmatpush1.msra.mxu0 0.0
  %611 = vmatprep.subr.mxu0 0.0
  %612 = vmatpush1.msra.mxu0 0.0
  %613 = vmatprep.subr.mxu0 0.0
  %614 = vmatpush1.msra.mxu0 0.0
  %615 = vmatprep.subr.mxu0 0.0
  %616 = vmatpush1.msra.mxu0 0.0
  %617 = vmatprep.subr.mxu0 0.0
  %618 = vmatpush1.msra.mxu0 0.0
  %619 = vmatprep.subr.mxu0 0.0
  %620 = vmatpush1.msra.mxu0 0.0
  %621 = vmatprep.subr.mxu0 0.0
  %622 = vmatpush1.msra.mxu0 0.0
  %623 = vmatprep.subr.mxu0 0.0
  %624 = vmatpush1.msra.mxu0 0.0
  %625 = vmatprep.subr.mxu0 0.0
  %626 = vmatpush1.msra.mxu0 0.0
  %627 = vmatprep.subr.mxu0 0.0
  %628 = vmatpush1.msra.mxu0 0.0
  %629 = vmatprep.subr.mxu0 0.0
  %630 = vmatpush1.msra.mxu0 0.0
  %631 = vmatprep.subr.mxu0 0.0
  %632 = vmatpush1.msra.mxu0 0.0
  %633 = vmatprep.subr.mxu0 0.0
  %634 = vmatpush1.msra.mxu0 0.0
  %635 = vmatprep.mubr.f32.mxu0 0.0
  %636 = vmatmul.mubr.f32.gmra.mrb[0].mxu0 %v569
  %v637 = vpop.f32.mrb[0].mxu0
  %v638 = vadd.f32 0.0, %v637
  %v639 = vpop.f32.mrb[0].mxu0
  %640 = vdwg.mxu0
  %642 = vrot.lane.b32.xlu0 %v452, 64
  %v643 = vpop.permute.xlu0 %642
  %v644 = vsel %vm355, %v643, 0
  %646 = vmatprep.subr.mxu0 0.0
  %647 = vmatpush1.msra.mxu0 %v58
  %648 = vmatprep.subr.mxu0 0.0
  %649 = vmatpush1.msra.mxu0 %v59
  %650 = vmatprep.subr.mxu0 0.0
  %651 = vmatpush1.msra.mxu0 %v60
  %652 = vmatprep.subr.mxu0 0.0
  %653 = vmatpush1.msra.mxu0 %v61
  %654 = vmatprep.subr.mxu0 0.0
  %655 = vmatpush1.msra.mxu0 0.0
  %656 = vmatprep.subr.mxu0 0.0
  %657 = vmatpush1.msra.mxu0 0.0
  %658 = vmatprep.subr.mxu0 0.0
  %659 = vmatpush1.msra.mxu0 0.0
  %660 = vmatprep.subr.mxu0 0.0
  %661 = vmatpush1.msra.mxu0 0.0
  %662 = vmatprep.subr.mxu0 0.0
  %663 = vmatpush1.msra.mxu0 0.0
  %664 = vmatprep.subr.mxu0 0.0
  %665 = vmatpush1.msra.mxu0 0.0
  %666 = vmatprep.subr.mxu0 0.0
  %667 = vmatpush1.msra.mxu0 0.0
  %668 = vmatprep.subr.mxu0 0.0
  %669 = vmatpush1.msra.mxu0 0.0
  %670 = vmatprep.subr.mxu0 0.0
  %671 = vmatpush1.msra.mxu0 0.0
  %672 = vmatprep.subr.mxu0 0.0
  %673 = vmatpush1.msra.mxu0 0.0
  %674 = vmatprep.subr.mxu0 0.0
  %675 = vmatpush1.msra.mxu0 0.0
  %676 = vmatprep.subr.mxu0 0.0
  %677 = vmatpush1.msra.mxu0 0.0
  %678 = vmatprep.subr.mxu0 0.0
  %679 = vmatpush1.msra.mxu0 0.0
  %680 = vmatprep.subr.mxu0 0.0
  %681 = vmatpush1.msra.mxu0 0.0
  %682 = vmatprep.subr.mxu0 0.0
  %683 = vmatpush1.msra.mxu0 0.0
  %684 = vmatprep.subr.mxu0 0.0
  %685 = vmatpush1.msra.mxu0 0.0
  %686 = vmatprep.subr.mxu0 0.0
  %687 = vmatpush1.msra.mxu0 0.0
  %688 = vmatprep.subr.mxu0 0.0
  %689 = vmatpush1.msra.mxu0 0.0
  %690 = vmatprep.subr.mxu0 0.0
  %691 = vmatpush1.msra.mxu0 0.0
  %692 = vmatprep.subr.mxu0 0.0
  %693 = vmatpush1.msra.mxu0 0.0
  %694 = vmatprep.subr.mxu0 0.0
  %695 = vmatpush1.msra.mxu0 0.0
  %696 = vmatprep.subr.mxu0 0.0
  %697 = vmatpush1.msra.mxu0 0.0
  %698 = vmatprep.subr.mxu0 0.0
  %699 = vmatpush1.msra.mxu0 0.0
  %700 = vmatprep.subr.mxu0 0.0
  %701 = vmatpush1.msra.mxu0 0.0
  %702 = vmatprep.subr.mxu0 0.0
  %703 = vmatpush1.msra.mxu0 0.0
  %704 = vmatprep.subr.mxu0 0.0
  %705 = vmatpush1.msra.mxu0 0.0
  %706 = vmatprep.subr.mxu0 0.0
  %707 = vmatpush1.msra.mxu0 0.0
  %708 = vmatprep.subr.mxu0 0.0
  %709 = vmatpush1.msra.mxu0 0.0
  %710 = vmatprep.mubr.f32.mxu0 0.0
  %711 = vmatmul.mubr.f32.gmra.mrb[0].mxu0 %v644
  %v712 = vpop.f32.mrb[0].mxu0
  %v713 = vadd.f32 %v638, %v712
  %v714 = vpop.f32.mrb[0].mxu0
  %715 = vdwg.mxu0
  %v716 = vadd.f32 %v713, %v171
  %v717 = vxor.u32 %v716, 2147483648
  %v718 = vmul.f32 %v717, 1.442695
  %v719 = vpow.pop %v718
  %v720 = vadd.f32 %v719, 1.0
  %v721 = vrcp.pop %v720
  %v722 = vmul.f32 1.0, %v721
  %v723 = vtanh.pop %v716
  %v724 = vmul.f32 %v722, %v446
  %726 = vrot.lane.b32.xlu0 %v723, 32
  %v727 = vpop.permute.xlu0 %726
  %v729 = vmul.f32 %v722, %v727
  %731 = vrot.lane.b32.xlu0 %v729, 32
  %v732 = vpop.permute.xlu0 %731
  %v734 = vadd.f32 %v724, %v732
  %v735 = vtanh.pop %v734
  %737 = vrot.lane.b32.xlu0 %v735, 32
  %v738 = vpop.permute.xlu0 %737
  %v740 = vmul.f32 %v722, %v738
  %v741 = vld [vmem:[#allocation2] sm:$0x30]
  %v742 = vld [vmem:[#allocation2 + $0x8] sm:$0x30]
  %743 = vmatprep.subr.mxu0 %v35
  %744 = vmatpush1.msra.mxu0 %v34
  %745 = vmatprep.subr.mxu0 %v37
  %746 = vmatpush1.msra.mxu0 %v36
  %747 = vmatprep.subr.mxu0 %v39
  %748 = vmatpush1.msra.mxu0 %v38
  %749 = vmatprep.subr.mxu0 %v41
  %750 = vmatpush1.msra.mxu0 %v40
  %751 = vmatprep.subr.mxu0 %v43
  %752 = vmatpush1.msra.mxu0 %v42
  %753 = vmatprep.subr.mxu0 %v45
  %754 = vmatpush1.msra.mxu0 %v44
  %755 = vmatprep.subr.mxu0 %v47
  %756 = vmatpush1.msra.mxu0 %v46
  %757 = vmatprep.subr.mxu0 %v49
  %758 = vmatpush1.msra.mxu0 %v48
  %759 = vmatprep.subr.mxu0 0.0
  %760 = vmatpush1.msra.mxu0 0.0
  %761 = vmatprep.subr.mxu0 0.0
  %762 = vmatpush1.msra.mxu0 0.0
  %763 = vmatprep.subr.mxu0 0.0
  %764 = vmatpush1.msra.mxu0 0.0
  %765 = vmatprep.subr.mxu0 0.0
  %766 = vmatpush1.msra.mxu0 0.0
  %767 = vmatprep.subr.mxu0 0.0
  %768 = vmatpush1.msra.mxu0 0.0
  %769 = vmatprep.subr.mxu0 0.0
  %770 = vmatpush1.msra.mxu0 0.0
  %771 = vmatprep.subr.mxu0 0.0
  %772 = vmatpush1.msra.mxu0 0.0
  %773 = vmatprep.subr.mxu0 0.0
  %774 = vmatpush1.msra.mxu0 0.0
  %775 = vmatprep.subr.mxu0 0.0
  %776 = vmatpush1.msra.mxu0 0.0
  %777 = vmatprep.subr.mxu0 0.0
  %778 = vmatpush1.msra.mxu0 0.0
  %779 = vmatprep.subr.mxu0 0.0
  %780 = vmatpush1.msra.mxu0 0.0
  %781 = vmatprep.subr.mxu0 0.0
  %782 = vmatpush1.msra.mxu0 0.0
  %783 = vmatprep.subr.mxu0 0.0
  %784 = vmatpush1.msra.mxu0 0.0
  %785 = vmatprep.subr.mxu0 0.0
  %786 = vmatpush1.msra.mxu0 0.0
  %787 = vmatprep.subr.mxu0 0.0
  %788 = vmatpush1.msra.mxu0 0.0
  %789 = vmatprep.subr.mxu0 0.0
  %790 = vmatpush1.msra.mxu0 0.0
  %791 = vmatprep.subr.mxu0 0.0
  %792 = vmatpush1.msra.mxu0 0.0
  %793 = vmatprep.subr.mxu0 0.0
  %794 = vmatpush1.msra.mxu0 0.0
  %795 = vmatprep.subr.mxu0 0.0
  %796 = vmatpush1.msra.mxu0 0.0
  %797 = vmatprep.subr.mxu0 0.0
  %798 = vmatpush1.msra.mxu0 0.0
  %799 = vmatprep.subr.mxu0 0.0
  %800 = vmatpush1.msra.mxu0 0.0
  %801 = vmatprep.subr.mxu0 0.0
  %802 = vmatpush1.msra.mxu0 0.0
  %803 = vmatprep.subr.mxu0 0.0
  %804 = vmatpush1.msra.mxu0 0.0
  %805 = vmatprep.subr.mxu0 0.0
  %806 = vmatpush1.msra.mxu0 0.0
  %807 = vmatprep.mubr.f32.mxu0 0.0
  %808 = vmatmul.mubr.f32.gmra.mrb[0].mxu0 %v569
  %v809 = vpop.f32.mrb[0].mxu0
  %v810 = vadd.f32 0.0, %v809
  %v811 = vpop.f32.mrb[0].mxu0
  %v812 = vadd.f32 0.0, %v811
  %813 = vdwg.mxu0
  %v816 = vrot.slane %v810, 4
  %v817 = vrot.slane %v812, 4
  %v820 = vadd.f32 %v741, %v816
  %v821 = vadd.f32 %v742, %v817
  %v822 = vxor.u32 %v820, 2147483648
  %v823 = vxor.u32 %v821, 2147483648
  %v824 = vmul.f32 %v822, 1.442695
  %v825 = vpow.pop %v824
  %v826 = vmul.f32 %v823, 1.442695
  %v827 = vpow.pop %v826
  %v828 = vadd.f32 %v825, 1.0
  %v829 = vadd.f32 %v827, 1.0
  %v830 = vrcp.pop %v828
  %v831 = vmul.f32 1.0, %v830
  %v832 = vrcp.pop %v829
  %v833 = vmul.f32 1.0, %v832
  %v834 = vtanh.pop %v821
  %v836 = vrot.slane %v560, 6
  %v838 = vmul.f32 %v831, %v836
  %840 = vrot.lane.b32.xlu0 %v834, 64
  %v841 = vpop.permute.xlu0 %840
  %v843 = vmul.f32 %v831, %v841
  %845 = vrot.lane.b32.xlu0 %v843, 64
  %v846 = vpop.permute.xlu0 %845
  %v848 = vadd.f32 %v838, %v846
  %v849 = vtanh.pop %v848
  %851 = vrot.lane.b32.xlu0 %v849, 64
  %v852 = vpop.permute.xlu0 %851
  %v854 = vmul.f32 %v833, %v852
  %v856 = vrot.slane %v854, 4
  %v857 = vsel %vm175, %v856, 0
  %859 = vmatprep.subr.mxu0 0.0
  %860 = vmatpush1.msra.mxu0 %v50
  %861 = vmatprep.subr.mxu0 0.0
  %862 = vmatpush1.msra.mxu0 %v51
  %863 = vmatprep.subr.mxu0 0.0
  %864 = vmatpush1.msra.mxu0 %v52
  %865 = vmatprep.subr.mxu0 0.0
  %866 = vmatpush1.msra.mxu0 %v53
  %867 = vmatprep.subr.mxu0 0.0
  %868 = vmatpush1.msra.mxu0 %v54
  %869 = vmatprep.subr.mxu0 0.0
  %870 = vmatpush1.msra.mxu0 %v55
  %871 = vmatprep.subr.mxu0 0.0
  %872 = vmatpush1.msra.mxu0 %v56
  %873 = vmatprep.subr.mxu0 0.0
  %874 = vmatpush1.msra.mxu0 %v57
  %875 = vmatprep.subr.mxu0 0.0
  %876 = vmatpush1.msra.mxu0 0.0
  %877 = vmatprep.subr.mxu0 0.0
  %878 = vmatpush1.msra.mxu0 0.0
  %879 = vmatprep.subr.mxu0 0.0
  %880 = vmatpush1.msra.mxu0 0.0
  %881 = vmatprep.subr.mxu0 0.0
  %882 = vmatpush1.msra.mxu0 0.0
  %883 = vmatprep.subr.mxu0 0.0
  %884 = vmatpush1.msra.mxu0 0.0
  %885 = vmatprep.subr.mxu0 0.0
  %886 = vmatpush1.msra.mxu0 0.0
  %887 = vmatprep.subr.mxu0 0.0
  %888 = vmatpush1.msra.mxu0 0.0
  %889 = vmatprep.subr.mxu0 0.0
  %890 = vmatpush1.msra.mxu0 0.0
  %891 = vmatprep.subr.mxu0 0.0
  %892 = vmatpush1.msra.mxu0 0.0
  %893 = vmatprep.subr.mxu0 0.0
  %894 = vmatpush1.msra.mxu0 0.0
  %895 = vmatprep.subr.mxu0 0.0
  %896 = vmatpush1.msra.mxu0 0.0
  %897 = vmatprep.subr.mxu0 0.0
  %898 = vmatpush1.msra.mxu0 0.0
  %899 = vmatprep.subr.mxu0 0.0
  %900 = vmatpush1.msra.mxu0 0.0
  %901 = vmatprep.subr.mxu0 0.0
  %902 = vmatpush1.msra.mxu0 0.0
  %903 = vmatprep.subr.mxu0 0.0
  %904 = vmatpush1.msra.mxu0 0.0
  %905 = vmatprep.subr.mxu0 0.0
  %906 = vmatpush1.msra.mxu0 0.0
  %907 = vmatprep.subr.mxu0 0.0
  %908 = vmatpush1.msra.mxu0 0.0
  %909 = vmatprep.subr.mxu0 0.0
  %910 = vmatpush1.msra.mxu0 0.0
  %911 = vmatprep.subr.mxu0 0.0
  %912 = vmatpush1.msra.mxu0 0.0
  %913 = vmatprep.subr.mxu0 0.0
  %914 = vmatpush1.msra.mxu0 0.0
  %915 = vmatprep.subr.mxu0 0.0
  %916 = vmatpush1.msra.mxu0 0.0
  %917 = vmatprep.subr.mxu0 0.0
  %918 = vmatpush1.msra.mxu0 0.0
  %919 = vmatprep.subr.mxu0 0.0
  %920 = vmatpush1.msra.mxu0 0.0
  %921 = vmatprep.subr.mxu0 0.0
  %922 = vmatpush1.msra.mxu0 0.0
  %923 = vmatprep.mubr.f32.mxu0 0.0
  %924 = vmatmul.mubr.f32.gmra.mrb[0].mxu0 %v857
  %v925 = vpop.f32.mrb[0].mxu0
  %v926 = vadd.f32 0.0, %v925
  %v927 = vpop.f32.mrb[0].mxu0
  %928 = vdwg.mxu0
  %930 = vrot.lane.b32.xlu0 %v740, 64
  %v931 = vpop.permute.xlu0 %930
  %v932 = vsel %vm355, %v931, 0
  %934 = vmatprep.subr.mxu0 0.0
  %935 = vmatpush1.msra.mxu0 %v58
  %936 = vmatprep.subr.mxu0 0.0
  %937 = vmatpush1.msra.mxu0 %v59
  %938 = vmatprep.subr.mxu0 0.0
  %939 = vmatpush1.msra.mxu0 %v60
  %940 = vmatprep.subr.mxu0 0.0
  %941 = vmatpush1.msra.mxu0 %v61
  %942 = vmatprep.subr.mxu0 0.0
  %943 = vmatpush1.msra.mxu0 0.0
  %944 = vmatprep.subr.mxu0 0.0
  %945 = vmatpush1.msra.mxu0 0.0
  %946 = vmatprep.subr.mxu0 0.0
  %947 = vmatpush1.msra.mxu0 0.0
  %948 = vmatprep.subr.mxu0 0.0
  %949 = vmatpush1.msra.mxu0 0.0
  %950 = vmatprep.subr.mxu0 0.0
  %951 = vmatpush1.msra.mxu0 0.0
  %952 = vmatprep.subr.mxu0 0.0
  %953 = vmatpush1.msra.mxu0 0.0
  %954 = vmatprep.subr.mxu0 0.0
  %955 = vmatpush1.msra.mxu0 0.0
  %956 = vmatprep.subr.mxu0 0.0
  %957 = vmatpush1.msra.mxu0 0.0
  %958 = vmatprep.subr.mxu0 0.0
  %959 = vmatpush1.msra.mxu0 0.0
  %960 = vmatprep.subr.mxu0 0.0
  %961 = vmatpush1.msra.mxu0 0.0
  %962 = vmatprep.subr.mxu0 0.0
  %963 = vmatpush1.msra.mxu0 0.0
  %964 = vmatprep.subr.mxu0 0.0
  %965 = vmatpush1.msra.mxu0 0.0
  %966 = vmatprep.subr.mxu0 0.0
  %967 = vmatpush1.msra.mxu0 0.0
  %968 = vmatprep.subr.mxu0 0.0
  %969 = vmatpush1.msra.mxu0 0.0
  %970 = vmatprep.subr.mxu0 0.0
  %971 = vmatpush1.msra.mxu0 0.0
  %972 = vmatprep.subr.mxu0 0.0
  %973 = vmatpush1.msra.mxu0 0.0
  %974 = vmatprep.subr.mxu0 0.0
  %975 = vmatpush1.msra.mxu0 0.0
  %976 = vmatprep.subr.mxu0 0.0
  %977 = vmatpush1.msra.mxu0 0.0
  %978 = vmatprep.subr.mxu0 0.0
  %979 = vmatpush1.msra.mxu0 0.0
  %980 = vmatprep.subr.mxu0 0.0
  %981 = vmatpush1.msra.mxu0 0.0
  %982 = vmatprep.subr.mxu0 0.0
  %983 = vmatpush1.msra.mxu0 0.0
  %984 = vmatprep.subr.mxu0 0.0
  %985 = vmatpush1.msra.mxu0 0.0
  %986 = vmatprep.subr.mxu0 0.0
  %987 = vmatpush1.msra.mxu0 0.0
  %988 = vmatprep.subr.mxu0 0.0
  %989 = vmatpush1.msra.mxu0 0.0
  %990 = vmatprep.subr.mxu0 0.0
  %991 = vmatpush1.msra.mxu0 0.0
  %992 = vmatprep.subr.mxu0 0.0
  %993 = vmatpush1.msra.mxu0 0.0
  %994 = vmatprep.subr.mxu0 0.0
  %995 = vmatpush1.msra.mxu0 0.0
  %996 = vmatprep.subr.mxu0 0.0
  %997 = vmatpush1.msra.mxu0 0.0
  %998 = vmatprep.mubr.f32.mxu0 0.0
  %999 = vmatmul.mubr.f32.gmra.mrb[0].mxu0 %v932
  %v1000 = vpop.f32.mrb[0].mxu0
  %v1001 = vadd.f32 %v926, %v1000
  %v1002 = vpop.f32.mrb[0].mxu0
  %1003 = vdwg.mxu0
  %v1004 = vadd.f32 %v1001, %v171
  %v1005 = vxor.u32 %v1004, 2147483648
  %v1006 = vmul.f32 %v1005, 1.442695
  %v1007 = vpow.pop %v1006
  %v1008 = vadd.f32 %v1007, 1.0
  %v1009 = vrcp.pop %v1008
  %v1010 = vmul.f32 1.0, %v1009
  %v1011 = vtanh.pop %v1004
  %v1012 = vmul.f32 %v1010, %v734
  %1014 = vrot.lane.b32.xlu0 %v1011, 32
  %v1015 = vpop.permute.xlu0 %1014
  %v1017 = vmul.f32 %v1010, %v1015
  %1019 = vrot.lane.b32.xlu0 %v1017, 32
  %v1020 = vpop.permute.xlu0 %1019
  %v1022 = vadd.f32 %v1012, %v1020
  %v1023 = vtanh.pop %v1022
  %1025 = vrot.lane.b32.xlu0 %v1023, 32
  %v1026 = vpop.permute.xlu0 %1025
  %v1028 = vmul.f32 %v1010, %v1026
  %v1029 = vld [vmem:[#allocation2] sm:$0xc0]
  %v1030 = vld [vmem:[#allocation2 + $0x8] sm:$0xc0]
  %1031 = vmatprep.subr.mxu0 %v35
  %1032 = vmatpush1.msra.mxu0 %v34
  %1033 = vmatprep.subr.mxu0 %v37
  %1034 = vmatpush1.msra.mxu0 %v36
  %1035 = vmatprep.subr.mxu0 %v39
  %1036 = vmatpush1.msra.mxu0 %v38
  %1037 = vmatprep.subr.mxu0 %v41
  %1038 = vmatpush1.msra.mxu0 %v40
  %1039 = vmatprep.subr.mxu0 %v43
  %1040 = vmatpush1.msra.mxu0 %v42
  %1041 = vmatprep.subr.mxu0 %v45
  %1042 = vmatpush1.msra.mxu0 %v44
  %1043 = vmatprep.subr.mxu0 %v47
  %1044 = vmatpush1.msra.mxu0 %v46
  %1045 = vmatprep.subr.mxu0 %v49
  %1046 = vmatpush1.msra.mxu0 %v48
  %1047 = vmatprep.subr.mxu0 0.0
  %1048 = vmatpush1.msra.mxu0 0.0
  %1049 = vmatprep.subr.mxu0 0.0
  %1050 = vmatpush1.msra.mxu0 0.0
  %1051 = vmatprep.subr.mxu0 0.0
  %1052 = vmatpush1.msra.mxu0 0.0
  %1053 = vmatprep.subr.mxu0 0.0
  %1054 = vmatpush1.msra.mxu0 0.0
  %1055 = vmatprep.subr.mxu0 0.0
  %1056 = vmatpush1.msra.mxu0 0.0
  %1057 = vmatprep.subr.mxu0 0.0
  %1058 = vmatpush1.msra.mxu0 0.0
  %1059 = vmatprep.subr.mxu0 0.0
  %1060 = vmatpush1.msra.mxu0 0.0
  %1061 = vmatprep.subr.mxu0 0.0
  %1062 = vmatpush1.msra.mxu0 0.0
  %1063 = vmatprep.subr.mxu0 0.0
  %1064 = vmatpush1.msra.mxu0 0.0
  %1065 = vmatprep.subr.mxu0 0.0
  %1066 = vmatpush1.msra.mxu0 0.0
  %1067 = vmatprep.subr.mxu0 0.0
  %1068 = vmatpush1.msra.mxu0 0.0
  %1069 = vmatprep.subr.mxu0 0.0
  %1070 = vmatpush1.msra.mxu0 0.0
  %1071 = vmatprep.subr.mxu0 0.0
  %1072 = vmatpush1.msra.mxu0 0.0
  %1073 = vmatprep.subr.mxu0 0.0
  %1074 = vmatpush1.msra.mxu0 0.0
  %1075 = vmatprep.subr.mxu0 0.0
  %1076 = vmatpush1.msra.mxu0 0.0
  %1077 = vmatprep.subr.mxu0 0.0
  %1078 = vmatpush1.msra.mxu0 0.0
  %1079 = vmatprep.subr.mxu0 0.0
  %1080 = vmatpush1.msra.mxu0 0.0
  %1081 = vmatprep.subr.mxu0 0.0
  %1082 = vmatpush1.msra.mxu0 0.0
  %1083 = vmatprep.subr.mxu0 0.0
  %1084 = vmatpush1.msra.mxu0 0.0
  %1085 = vmatprep.subr.mxu0 0.0
  %1086 = vmatpush1.msra.mxu0 0.0
  %1087 = vmatprep.subr.mxu0 0.0
  %1088 = vmatpush1.msra.mxu0 0.0
  %1089 = vmatprep.subr.mxu0 0.0
  %1090 = vmatpush1.msra.mxu0 0.0
  %1091 = vmatprep.subr.mxu0 0.0
  %1092 = vmatpush1.msra.mxu0 0.0
  %1093 = vmatprep.subr.mxu0 0.0
  %1094 = vmatpush1.msra.mxu0 0.0
  %1095 = vmatprep.mubr.f32.mxu0 0.0
  %1096 = vmatmul.mubr.f32.gmra.mrb[0].mxu0 %v857
  %v1097 = vpop.f32.mrb[0].mxu0
  %v1098 = vadd.f32 0.0, %v1097
  %v1099 = vpop.f32.mrb[0].mxu0
  %v1100 = vadd.f32 0.0, %v1099
  %1101 = vdwg.mxu0
  %v1104 = vrot.slane %v1098, 2
  %v1105 = vrot.slane %v1100, 2
  %v1108 = vadd.f32 %v1029, %v1104
  %v1109 = vadd.f32 %v1030, %v1105
  %v1110 = vxor.u32 %v1108, 2147483648
  %v1111 = vxor.u32 %v1109, 2147483648
  %v1112 = vmul.f32 %v1110, 1.442695
  %v1113 = vpow.pop %v1112
  %v1114 = vmul.f32 %v1111, 1.442695
  %v1115 = vpow.pop %v1114
  %v1116 = vadd.f32 %v1113, 1.0
  %v1117 = vadd.f32 %v1115, 1.0
  %v1118 = vrcp.pop %v1116
  %v1119 = vmul.f32 1.0, %v1118
  %v1120 = vrcp.pop %v1117
  %v1121 = vmul.f32 1.0, %v1120
  %v1122 = vtanh.pop %v1109
  %v1124 = vrot.slane %v848, 6
  %v1126 = vmul.f32 %v1119, %v1124
  %1128 = vrot.lane.b32.xlu0 %v1122, 64
  %v1129 = vpop.permute.xlu0 %1128
  %v1131 = vmul.f32 %v1119, %v1129
  %1133 = vrot.lane.b32.xlu0 %v1131, 64
  %v1134 = vpop.permute.xlu0 %1133
  %v1136 = vadd.f32 %v1126, %v1134
  %v1137 = vtanh.pop %v1136
  %1139 = vrot.lane.b32.xlu0 %v1137, 64
  %v1140 = vpop.permute.xlu0 %1139
  %v1142 = vmul.f32 %v1121, %v1140
  %v1144 = vrot.slane %v1142, 6
  %v1145 = vsel %vm175, %v1144, 0
  %1147 = vmatprep.subr.mxu0 0.0
  %1148 = vmatpush1.msra.mxu0 %v50
  %1149 = vmatprep.subr.mxu0 0.0
  %1150 = vmatpush1.msra.mxu0 %v51
  %1151 = vmatprep.subr.mxu0 0.0
  %1152 = vmatpush1.msra.mxu0 %v52
  %1153 = vmatprep.subr.mxu0 0.0
  %1154 = vmatpush1.msra.mxu0 %v53
  %1155 = vmatprep.subr.mxu0 0.0
  %1156 = vmatpush1.msra.mxu0 %v54
  %1157 = vmatprep.subr.mxu0 0.0
  %1158 = vmatpush1.msra.mxu0 %v55
  %1159 = vmatprep.subr.mxu0 0.0
  %1160 = vmatpush1.msra.mxu0 %v56
  %1161 = vmatprep.subr.mxu0 0.0
  %1162 = vmatpush1.msra.mxu0 %v57
  %1163 = vmatprep.subr.mxu0 0.0
  %1164 = vmatpush1.msra.mxu0 0.0
  %1165 = vmatprep.subr.mxu0 0.0
  %1166 = vmatpush1.msra.mxu0 0.0
  %1167 = vmatprep.subr.mxu0 0.0
  %1168 = vmatpush1.msra.mxu0 0.0
  %1169 = vmatprep.subr.mxu0 0.0
  %1170 = vmatpush1.msra.mxu0 0.0
  %1171 = vmatprep.subr.mxu0 0.0
  %1172 = vmatpush1.msra.mxu0 0.0
  %1173 = vmatprep.subr.mxu0 0.0
  %1174 = vmatpush1.msra.mxu0 0.0
  %1175 = vmatprep.subr.mxu0 0.0
  %1176 = vmatpush1.msra.mxu0 0.0
  %1177 = vmatprep.subr.mxu0 0.0
  %1178 = vmatpush1.msra.mxu0 0.0
  %1179 = vmatprep.subr.mxu0 0.0
  %1180 = vmatpush1.msra.mxu0 0.0
  %1181 = vmatprep.subr.mxu0 0.0
  %1182 = vmatpush1.msra.mxu0 0.0
  %1183 = vmatprep.subr.mxu0 0.0
  %1184 = vmatpush1.msra.mxu0 0.0
  %1185 = vmatprep.subr.mxu0 0.0
  %1186 = vmatpush1.msra.mxu0 0.0
  %1187 = vmatprep.subr.mxu0 0.0
  %1188 = vmatpush1.msra.mxu0 0.0
  %1189 = vmatprep.subr.mxu0 0.0
  %1190 = vmatpush1.msra.mxu0 0.0
  %1191 = vmatprep.subr.mxu0 0.0
  %1192 = vmatpush1.msra.mxu0 0.0
  %1193 = vmatprep.subr.mxu0 0.0
  %1194 = vmatpush1.msra.mxu0 0.0
  %1195 = vmatprep.subr.mxu0 0.0
  %1196 = vmatpush1.msra.mxu0 0.0
  %1197 = vmatprep.subr.mxu0 0.0
  %1198 = vmatpush1.msra.mxu0 0.0
  %1199 = vmatprep.subr.mxu0 0.0
  %1200 = vmatpush1.msra.mxu0 0.0
  %1201 = vmatprep.subr.mxu0 0.0
  %1202 = vmatpush1.msra.mxu0 0.0
  %1203 = vmatprep.subr.mxu0 0.0
  %1204 = vmatpush1.msra.mxu0 0.0
  %1205 = vmatprep.subr.mxu0 0.0
  %1206 = vmatpush1.msra.mxu0 0.0
  %1207 = vmatprep.subr.mxu0 0.0
  %1208 = vmatpush1.msra.mxu0 0.0
  %1209 = vmatprep.subr.mxu0 0.0
  %1210 = vmatpush1.msra.mxu0 0.0
  %1211 = vmatprep.mubr.f32.mxu0 0.0
  %1212 = vmatmul.mubr.f32.gmra.mrb[0].mxu0 %v1145
  %v1213 = vpop.f32.mrb[0].mxu0
  %v1214 = vadd.f32 0.0, %v1213
  %v1215 = vpop.f32.mrb[0].mxu0
  %1216 = vdwg.mxu0
  %1218 = vrot.lane.b32.xlu0 %v1028, 64
  %v1219 = vpop.permute.xlu0 %1218
  %v1220 = vsel %vm355, %v1219, 0
  %1222 = vmatprep.subr.mxu0 0.0
  %1223 = vmatpush1.msra.mxu0 %v58
  %1224 = vmatprep.subr.mxu0 0.0
  %1225 = vmatpush1.msra.mxu0 %v59
  %1226 = vmatprep.subr.mxu0 0.0
  %1227 = vmatpush1.msra.mxu0 %v60
  %1228 = vmatprep.subr.mxu0 0.0
  %1229 = vmatpush1.msra.mxu0 %v61
  %1230 = vmatprep.subr.mxu0 0.0
  %1231 = vmatpush1.msra.mxu0 0.0
  %1232 = vmatprep.subr.mxu0 0.0
  %1233 = vmatpush1.msra.mxu0 0.0
  %1234 = vmatprep.subr.mxu0 0.0
  %1235 = vmatpush1.msra.mxu0 0.0
  %1236 = vmatprep.subr.mxu0 0.0
  %1237 = vmatpush1.msra.mxu0 0.0
  %1238 = vmatprep.subr.mxu0 0.0
  %1239 = vmatpush1.msra.mxu0 0.0
  %1240 = vmatprep.subr.mxu0 0.0
  %1241 = vmatpush1.msra.mxu0 0.0
  %1242 = vmatprep.subr.mxu0 0.0
  %1243 = vmatpush1.msra.mxu0 0.0
  %1244 = vmatprep.subr.mxu0 0.0
  %1245 = vmatpush1.msra.mxu0 0.0
  %1246 = vmatprep.subr.mxu0 0.0
  %1247 = vmatpush1.msra.mxu0 0.0
  %1248 = vmatprep.subr.mxu0 0.0
  %1249 = vmatpush1.msra.mxu0 0.0
  %1250 = vmatprep.subr.mxu0 0.0
  %1251 = vmatpush1.msra.mxu0 0.0
  %1252 = vmatprep.subr.mxu0 0.0
  %1253 = vmatpush1.msra.mxu0 0.0
  %1254 = vmatprep.subr.mxu0 0.0
  %1255 = vmatpush1.msra.mxu0 0.0
  %1256 = vmatprep.subr.mxu0 0.0
  %1257 = vmatpush1.msra.mxu0 0.0
  %1258 = vmatprep.subr.mxu0 0.0
  %1259 = vmatpush1.msra.mxu0 0.0
  %1260 = vmatprep.subr.mxu0 0.0
  %1261 = vmatpush1.msra.mxu0 0.0
  %1262 = vmatprep.subr.mxu0 0.0
  %1263 = vmatpush1.msra.mxu0 0.0
  %1264 = vmatprep.subr.mxu0 0.0
  %1265 = vmatpush1.msra.mxu0 0.0
  %1266 = vmatprep.subr.mxu0 0.0
  %1267 = vmatpush1.msra.mxu0 0.0
  %1268 = vmatprep.subr.mxu0 0.0
  %1269 = vmatpush1.msra.mxu0 0.0
  %1270 = vmatprep.subr.mxu0 0.0
  %1271 = vmatpush1.msra.mxu0 0.0
  %1272 = vmatprep.subr.mxu0 0.0
  %1273 = vmatpush1.msra.mxu0 0.0
  %1274 = vmatprep.subr.mxu0 0.0
  %1275 = vmatpush1.msra.mxu0 0.0
  %1276 = vmatprep.subr.mxu0 0.0
  %1277 = vmatpush1.msra.mxu0 0.0
  %1278 = vmatprep.subr.mxu0 0.0
  %1279 = vmatpush1.msra.mxu0 0.0
  %1280 = vmatprep.subr.mxu0 0.0
  %1281 = vmatpush1.msra.mxu0 0.0
  %1282 = vmatprep.subr.mxu0 0.0
  %1283 = vmatpush1.msra.mxu0 0.0
  %1284 = vmatprep.subr.mxu0 0.0
  %1285 = vmatpush1.msra.mxu0 0.0
  %1286 = vmatprep.mubr.f32.mxu0 0.0
  %1287 = vmatmul.mubr.f32.gmra.mrb[0].mxu0 %v1220
  %v1288 = vpop.f32.mrb[0].mxu0
  %v1289 = vadd.f32 %v1214, %v1288
  %v1290 = vpop.f32.mrb[0].mxu0
  %1291 = vdwg.mxu0
  %v1292 = vadd.f32 %v1289, %v171
  %v1293 = vxor.u32 %v1292, 2147483648
  %v1294 = vmul.f32 %v1293, 1.442695
  %v1295 = vpow.pop %v1294
  %v1296 = vadd.f32 %v1295, 1.0
  %v1297 = vrcp.pop %v1296
  %v1298 = vmul.f32 1.0, %v1297
  %v1299 = vtanh.pop %v1292
  %v1300 = vmul.f32 %v1298, %v1022
  %1302 = vrot.lane.b32.xlu0 %v1299, 32
  %v1303 = vpop.permute.xlu0 %1302
  %v1305 = vmul.f32 %v1298, %v1303
  %1307 = vrot.lane.b32.xlu0 %v1305, 32
  %v1308 = vpop.permute.xlu0 %1307
  %v1310 = vadd.f32 %v1300, %v1308
  %v1311 = vtanh.pop %v1310
  %1313 = vrot.lane.b32.xlu0 %v1311, 32
  %v1314 = vpop.permute.xlu0 %1313
  %v1316 = vmul.f32 %v1298, %v1314
  %v1317 = vld [vmem:[#allocation2 + $0x10] sm:$0x3]
  %v1318 = vld [vmem:[#allocation2 + $0x18] sm:$0x3]
  %1319 = vmatprep.subr.mxu0 %v35
  %1320 = vmatpush1.msra.mxu0 %v34
  %1321 = vmatprep.subr.mxu0 %v37
  %1322 = vmatpush1.msra.mxu0 %v36
  %1323 = vmatprep.subr.mxu0 %v39
  %1324 = vmatpush1.msra.mxu0 %v38
  %1325 = vmatprep.subr.mxu0 %v41
  %1326 = vmatpush1.msra.mxu0 %v40
  %1327 = vmatprep.subr.mxu0 %v43
  %1328 = vmatpush1.msra.mxu0 %v42
  %1329 = vmatprep.subr.mxu0 %v45
  %1330 = vmatpush1.msra.mxu0 %v44
  %1331 = vmatprep.subr.mxu0 %v47
  %1332 = vmatpush1.msra.mxu0 %v46
  %1333 = vmatprep.subr.mxu0 %v49
  %1334 = vmatpush1.msra.mxu0 %v48
  %1335 = vmatprep.subr.mxu0 0.0
  %1336 = vmatpush1.msra.mxu0 0.0
  %1337 = vmatprep.subr.mxu0 0.0
  %1338 = vmatpush1.msra.mxu0 0.0
  %1339 = vmatprep.subr.mxu0 0.0
  %1340 = vmatpush1.msra.mxu0 0.0
  %1341 = vmatprep.subr.mxu0 0.0
  %1342 = vmatpush1.msra.mxu0 0.0
  %1343 = vmatprep.subr.mxu0 0.0
  %1344 = vmatpush1.msra.mxu0 0.0
  %1345 = vmatprep.subr.mxu0 0.0
  %1346 = vmatpush1.msra.mxu0 0.0
  %1347 = vmatprep.subr.mxu0 0.0
  %1348 = vmatpush1.msra.mxu0 0.0
  %1349 = vmatprep.subr.mxu0 0.0
  %1350 = vmatpush1.msra.mxu0 0.0
  %1351 = vmatprep.subr.mxu0 0.0
  %1352 = vmatpush1.msra.mxu0 0.0
  %1353 = vmatprep.subr.mxu0 0.0
  %1354 = vmatpush1.msra.mxu0 0.0
  %1355 = vmatprep.subr.mxu0 0.0
  %1356 = vmatpush1.msra.mxu0 0.0
  %1357 = vmatprep.subr.mxu0 0.0
  %1358 = vmatpush1.msra.mxu0 0.0
  %1359 = vmatprep.subr.mxu0 0.0
  %1360 = vmatpush1.msra.mxu0 0.0
  %1361 = vmatprep.subr.mxu0 0.0
  %1362 = vmatpush1.msra.mxu0 0.0
  %1363 = vmatprep.subr.mxu0 0.0
  %1364 = vmatpush1.msra.mxu0 0.0
  %1365 = vmatprep.subr.mxu0 0.0
  %1366 = vmatpush1.msra.mxu0 0.0
  %1367 = vmatprep.subr.mxu0 0.0
  %1368 = vmatpush1.msra.mxu0 0.0
  %1369 = vmatprep.subr.mxu0 0.0
  %1370 = vmatpush1.msra.mxu0 0.0
  %1371 = vmatprep.subr.mxu0 0.0
  %1372 = vmatpush1.msra.mxu0 0.0
  %1373 = vmatprep.subr.mxu0 0.0
  %1374 = vmatpush1.msra.mxu0 0.0
  %1375 = vmatprep.subr.mxu0 0.0
  %1376 = vmatpush1.msra.mxu0 0.0
  %1377 = vmatprep.subr.mxu0 0.0
  %1378 = vmatpush1.msra.mxu0 0.0
  %1379 = vmatprep.subr.mxu0 0.0
  %1380 = vmatpush1.msra.mxu0 0.0
  %1381 = vmatprep.subr.mxu0 0.0
  %1382 = vmatpush1.msra.mxu0 0.0
  %1383 = vmatprep.mubr.f32.mxu0 0.0
  %1384 = vmatmul.mubr.f32.gmra.mrb[0].mxu0 %v1145
  %v1385 = vpop.f32.mrb[0].mxu0
  %v1386 = vadd.f32 0.0, %v1385
  %v1387 = vpop.f32.mrb[0].mxu0
  %v1388 = vadd.f32 0.0, %v1387
  %1389 = vdwg.mxu0
  %v1390 = vadd.f32 %v1317, %v1386
  %v1391 = vadd.f32 %v1318, %v1388
  %v1392 = vxor.u32 %v1390, 2147483648
  %v1393 = vxor.u32 %v1391, 2147483648
  %v1394 = vmul.f32 %v1392, 1.442695
  %v1395 = vpow.pop %v1394
  %v1396 = vmul.f32 %v1393, 1.442695
  %v1397 = vpow.pop %v1396
  %v1398 = vadd.f32 %v1395, 1.0
  %v1399 = vadd.f32 %v1397, 1.0
  %v1400 = vrcp.pop %v1398
  %v1401 = vmul.f32 1.0, %v1400
  %v1402 = vrcp.pop %v1399
  %v1403 = vmul.f32 1.0, %v1402
  %v1404 = vtanh.pop %v1391
  %v1406 = vrot.slane %v1136, 6
  %v1408 = vmul.f32 %v1401, %v1406
  %1410 = vrot.lane.b32.xlu0 %v1404, 64
  %v1411 = vpop.permute.xlu0 %1410
  %v1413 = vmul.f32 %v1401, %v1411
  %1415 = vrot.lane.b32.xlu0 %v1413, 64
  %v1416 = vpop.permute.xlu0 %1415
  %v1418 = vadd.f32 %v1408, %v1416
  %v1419 = vtanh.pop %v1418
  %1421 = vrot.lane.b32.xlu0 %v1419, 64
  %v1422 = vpop.permute.xlu0 %1421
  %v1424 = vmul.f32 %v1403, %v1422
  %v1426 = vsel %vm175, %v1424, 0
  %1428 = vmatprep.subr.mxu0 0.0
  %1429 = vmatpush1.msra.mxu0 %v50
  %1430 = vmatprep.subr.mxu0 0.0
  %1431 = vmatpush1.msra.mxu0 %v51
  %1432 = vmatprep.subr.mxu0 0.0
  %1433 = vmatpush1.msra.mxu0 %v52
  %1434 = vmatprep.subr.mxu0 0.0
  %1435 = vmatpush1.msra.mxu0 %v53
  %1436 = vmatprep.subr.mxu0 0.0
  %1437 = vmatpush1.msra.mxu0 %v54
  %1438 = vmatprep.subr.mxu0 0.0
  %1439 = vmatpush1.msra.mxu0 %v55
  %1440 = vmatprep.subr.mxu0 0.0
  %1441 = vmatpush1.msra.mxu0 %v56
  %1442 = vmatprep.subr.mxu0 0.0
  %1443 = vmatpush1.msra.mxu0 %v57
  %1444 = vmatprep.subr.mxu0 0.0
  %1445 = vmatpush1.msra.mxu0 0.0
  %1446 = vmatprep.subr.mxu0 0.0
  %1447 = vmatpush1.msra.mxu0 0.0
  %1448 = vmatprep.subr.mxu0 0.0
  %1449 = vmatpush1.msra.mxu0 0.0
  %1450 = vmatprep.subr.mxu0 0.0
  %1451 = vmatpush1.msra.mxu0 0.0
  %1452 = vmatprep.subr.mxu0 0.0
  %1453 = vmatpush1.msra.mxu0 0.0
  %1454 = vmatprep.subr.mxu0 0.0
  %1455 = vmatpush1.msra.mxu0 0.0
  %1456 = vmatprep.subr.mxu0 0.0
  %1457 = vmatpush1.msra.mxu0 0.0
  %1458 = vmatprep.subr.mxu0 0.0
  %1459 = vmatpush1.msra.mxu0 0.0
  %1460 = vmatprep.subr.mxu0 0.0
  %1461 = vmatpush1.msra.mxu0 0.0
  %1462 = vmatprep.subr.mxu0 0.0
  %1463 = vmatpush1.msra.mxu0 0.0
  %1464 = vmatprep.subr.mxu0 0.0
  %1465 = vmatpush1.msra.mxu0 0.0
  %1466 = vmatprep.subr.mxu0 0.0
  %1467 = vmatpush1.msra.mxu0 0.0
  %1468 = vmatprep.subr.mxu0 0.0
  %1469 = vmatpush1.msra.mxu0 0.0
  %1470 = vmatprep.subr.mxu0 0.0
  %1471 = vmatpush1.msra.mxu0 0.0
  %1472 = vmatprep.subr.mxu0 0.0
  %1473 = vmatpush1.msra.mxu0 0.0
  %1474 = vmatprep.subr.mxu0 0.0
  %1475 = vmatpush1.msra.mxu0 0.0
  %1476 = vmatprep.subr.mxu0 0.0
  %1477 = vmatpush1.msra.mxu0 0.0
  %1478 = vmatprep.subr.mxu0 0.0
  %1479 = vmatpush1.msra.mxu0 0.0
  %1480 = vmatprep.subr.mxu0 0.0
  %1481 = vmatpush1.msra.mxu0 0.0
  %1482 = vmatprep.subr.mxu0 0.0
  %1483 = vmatpush1.msra.mxu0 0.0
  %1484 = vmatprep.subr.mxu0 0.0
  %1485 = vmatpush1.msra.mxu0 0.0
  %1486 = vmatprep.subr.mxu0 0.0
  %1487 = vmatpush1.msra.mxu0 0.0
  %1488 = vmatprep.subr.mxu0 0.0
  %1489 = vmatpush1.msra.mxu0 0.0
  %1490 = vmatprep.subr.mxu0 0.0
  %1491 = vmatpush1.msra.mxu0 0.0
  %1492 = vmatprep.mubr.f32.mxu0 0.0
  %1493 = vmatmul.mubr.f32.gmra.mrb[0].mxu0 %v1426
  %v1494 = vpop.f32.mrb[0].mxu0
  %v1495 = vadd.f32 0.0, %v1494
  %v1496 = vpop.f32.mrb[0].mxu0
  %1497 = vdwg.mxu0
  %1499 = vrot.lane.b32.xlu0 %v1316, 64
  %v1500 = vpop.permute.xlu0 %1499
  %v1501 = vsel %vm355, %v1500, 0
  %1503 = vmatprep.subr.mxu0 0.0
  %1504 = vmatpush1.msra.mxu0 %v58
  %1505 = vmatprep.subr.mxu0 0.0
  %1506 = vmatpush1.msra.mxu0 %v59
  %1507 = vmatprep.subr.mxu0 0.0
  %1508 = vmatpush1.msra.mxu0 %v60
  %1509 = vmatprep.subr.mxu0 0.0
  %1510 = vmatpush1.msra.mxu0 %v61
  %1511 = vmatprep.subr.mxu0 0.0
  %1512 = vmatpush1.msra.mxu0 0.0
  %1513 = vmatprep.subr.mxu0 0.0
  %1514 = vmatpush1.msra.mxu0 0.0
  %1515 = vmatprep.subr.mxu0 0.0
  %1516 = vmatpush1.msra.mxu0 0.0
  %1517 = vmatprep.subr.mxu0 0.0
  %1518 = vmatpush1.msra.mxu0 0.0
  %1519 = vmatprep.subr.mxu0 0.0
  %1520 = vmatpush1.msra.mxu0 0.0
  %1521 = vmatprep.subr.mxu0 0.0
  %1522 = vmatpush1.msra.mxu0 0.0
  %1523 = vmatprep.subr.mxu0 0.0
  %1524 = vmatpush1.msra.mxu0 0.0
  %1525 = vmatprep.subr.mxu0 0.0
  %1526 = vmatpush1.msra.mxu0 0.0
  %1527 = vmatprep.subr.mxu0 0.0
  %1528 = vmatpush1.msra.mxu0 0.0
  %1529 = vmatprep.subr.mxu0 0.0
  %1530 = vmatpush1.msra.mxu0 0.0
  %1531 = vmatprep.subr.mxu0 0.0
  %1532 = vmatpush1.msra.mxu0 0.0
  %1533 = vmatprep.subr.mxu0 0.0
  %1534 = vmatpush1.msra.mxu0 0.0
  %1535 = vmatprep.subr.mxu0 0.0
  %1536 = vmatpush1.msra.mxu0 0.0
  %1537 = vmatprep.subr.mxu0 0.0
  %1538 = vmatpush1.msra.mxu0 0.0
  %1539 = vmatprep.subr.mxu0 0.0
  %1540 = vmatpush1.msra.mxu0 0.0
  %1541 = vmatprep.subr.mxu0 0.0
  %1542 = vmatpush1.msra.mxu0 0.0
  %1543 = vmatprep.subr.mxu0 0.0
  %1544 = vmatpush1.msra.mxu0 0.0
  %1545 = vmatprep.subr.mxu0 0.0
  %1546 = vmatpush1.msra.mxu0 0.0
  %1547 = vmatprep.subr.mxu0 0.0
  %1548 = vmatpush1.msra.mxu0 0.0
  %1549 = vmatprep.subr.mxu0 0.0
  %1550 = vmatpush1.msra.mxu0 0.0
  %1551 = vmatprep.subr.mxu0 0.0
  %1552 = vmatpush1.msra.mxu0 0.0
  %1553 = vmatprep.subr.mxu0 0.0
  %1554 = vmatpush1.msra.mxu0 0.0
  %1555 = vmatprep.subr.mxu0 0.0
  %1556 = vmatpush1.msra.mxu0 0.0
  %1557 = vmatprep.subr.mxu0 0.0
  %1558 = vmatpush1.msra.mxu0 0.0
  %1559 = vmatprep.subr.mxu0 0.0
  %1560 = vmatpush1.msra.mxu0 0.0
  %1561 = vmatprep.subr.mxu0 0.0
  %1562 = vmatpush1.msra.mxu0 0.0
  %1563 = vmatprep.subr.mxu0 0.0
  %1564 = vmatpush1.msra.mxu0 0.0
  %1565 = vmatprep.subr.mxu0 0.0
  %1566 = vmatpush1.msra.mxu0 0.0
  %1567 = vmatprep.mubr.f32.mxu0 0.0
  %1568 = vmatmul.mubr.f32.gmra.mrb[0].mxu0 %v1501
  %v1569 = vpop.f32.mrb[0].mxu0
  %v1570 = vadd.f32 %v1495, %v1569
  %v1571 = vpop.f32.mrb[0].mxu0
  %1572 = vdwg.mxu0
  %v1573 = vadd.f32 %v1570, %v171
  %v1574 = vxor.u32 %v1573, 2147483648
  %v1575 = vmul.f32 %v1574, 1.442695
  %v1576 = vpow.pop %v1575
  %v1577 = vadd.f32 %v1576, 1.0
  %v1578 = vrcp.pop %v1577
  %v1579 = vmul.f32 1.0, %v1578
  %v1580 = vtanh.pop %v1573
  %v1581 = vmul.f32 %v1579, %v1310
  %1583 = vrot.lane.b32.xlu0 %v1580, 32
  %v1584 = vpop.permute.xlu0 %1583
  %v1586 = vmul.f32 %v1579, %v1584
  %1588 = vrot.lane.b32.xlu0 %v1586, 32
  %v1589 = vpop.permute.xlu0 %1588
  %v1591 = vadd.f32 %v1581, %v1589
  %v1592 = vtanh.pop %v1591
  %1594 = vrot.lane.b32.xlu0 %v1592, 32
  %v1595 = vpop.permute.xlu0 %1594
  %v1597 = vmul.f32 %v1579, %v1595
  %v1598 = vld [vmem:[#allocation2 + $0x10] sm:$0xc]
  %v1599 = vld [vmem:[#allocation2 + $0x18] sm:$0xc]
  %1600 = vmatprep.subr.mxu0 %v35
  %1601 = vmatpush1.msra.mxu0 %v34
  %1602 = vmatprep.subr.mxu0 %v37
  %1603 = vmatpush1.msra.mxu0 %v36
  %1604 = vmatprep.subr.mxu0 %v39
  %1605 = vmatpush1.msra.mxu0 %v38
  %1606 = vmatprep.subr.mxu0 %v41
  %1607 = vmatpush1.msra.mxu0 %v40
  %1608 = vmatprep.subr.mxu0 %v43
  %1609 = vmatpush1.msra.mxu0 %v42
  %1610 = vmatprep.subr.mxu0 %v45
  %1611 = vmatpush1.msra.mxu0 %v44
  %1612 = vmatprep.subr.mxu0 %v47
  %1613 = vmatpush1.msra.mxu0 %v46
  %1614 = vmatprep.subr.mxu0 %v49
  %1615 = vmatpush1.msra.mxu0 %v48
  %1616 = vmatprep.subr.mxu0 0.0
  %1617 = vmatpush1.msra.mxu0 0.0
  %1618 = vmatprep.subr.mxu0 0.0
  %1619 = vmatpush1.msra.mxu0 0.0
  %1620 = vmatprep.subr.mxu0 0.0
  %1621 = vmatpush1.msra.mxu0 0.0
  %1622 = vmatprep.subr.mxu0 0.0
  %1623 = vmatpush1.msra.mxu0 0.0
  %1624 = vmatprep.subr.mxu0 0.0
  %1625 = vmatpush1.msra.mxu0 0.0
  %1626 = vmatprep.subr.mxu0 0.0
  %1627 = vmatpush1.msra.mxu0 0.0
  %1628 = vmatprep.subr.mxu0 0.0
  %1629 = vmatpush1.msra.mxu0 0.0
  %1630 = vmatprep.subr.mxu0 0.0
  %1631 = vmatpush1.msra.mxu0 0.0
  %1632 = vmatprep.subr.mxu0 0.0
  %1633 = vmatpush1.msra.mxu0 0.0
  %1634 = vmatprep.subr.mxu0 0.0
  %1635 = vmatpush1.msra.mxu0 0.0
  %1636 = vmatprep.subr.mxu0 0.0
  %1637 = vmatpush1.msra.mxu0 0.0
  %1638 = vmatprep.subr.mxu0 0.0
  %1639 = vmatpush1.msra.mxu0 0.0
  %1640 = vmatprep.subr.mxu0 0.0
  %1641 = vmatpush1.msra.mxu0 0.0
  %1642 = vmatprep.subr.mxu0 0.0
  %1643 = vmatpush1.msra.mxu0 0.0
  %1644 = vmatprep.subr.mxu0 0.0
  %1645 = vmatpush1.msra.mxu0 0.0
  %1646 = vmatprep.subr.mxu0 0.0
  %1647 = vmatpush1.msra.mxu0 0.0
  %1648 = vmatprep.subr.mxu0 0.0
  %1649 = vmatpush1.msra.mxu0 0.0
  %1650 = vmatprep.subr.mxu0 0.0
  %1651 = vmatpush1.msra.mxu0 0.0
  %1652 = vmatprep.subr.mxu0 0.0
  %1653 = vmatpush1.msra.mxu0 0.0
  %1654 = vmatprep.subr.mxu0 0.0
  %1655 = vmatpush1.msra.mxu0 0.0
  %1656 = vmatprep.subr.mxu0 0.0
  %1657 = vmatpush1.msra.mxu0 0.0
  %1658 = vmatprep.subr.mxu0 0.0
  %1659 = vmatpush1.msra.mxu0 0.0
  %1660 = vmatprep.subr.mxu0 0.0
  %1661 = vmatpush1.msra.mxu0 0.0
  %1662 = vmatprep.subr.mxu0 0.0
  %1663 = vmatpush1.msra.mxu0 0.0
  %1664 = vmatprep.mubr.f32.mxu0 0.0
  %1665 = vmatmul.mubr.f32.gmra.mrb[0].mxu0 %v1426
  %v1666 = vpop.f32.mrb[0].mxu0
  %v1667 = vadd.f32 0.0, %v1666
  %v1668 = vpop.f32.mrb[0].mxu0
  %v1669 = vadd.f32 0.0, %v1668
  %1670 = vdwg.mxu0
  %v1673 = vrot.slane %v1667, 6
  %v1674 = vrot.slane %v1669, 6
  %v1677 = vadd.f32 %v1598, %v1673
  %v1678 = vadd.f32 %v1599, %v1674
  %v1679 = vxor.u32 %v1677, 2147483648
  %v1680 = vxor.u32 %v1678, 2147483648
  %v1681 = vmul.f32 %v1679, 1.442695
  %v1682 = vpow.pop %v1681
  %v1683 = vmul.f32 %v1680, 1.442695
  %v1684 = vpow.pop %v1683
  %v1685 = vadd.f32 %v1682, 1.0
  %v1686 = vadd.f32 %v1684, 1.0
  %v1687 = vrcp.pop %v1685
  %v1688 = vmul.f32 1.0, %v1687
  %v1689 = vrcp.pop %v1686
  %v1690 = vmul.f32 1.0, %v1689
  %v1691 = vtanh.pop %v1678
  %v1693 = vrot.slane %v1418, 6
  %v1695 = vmul.f32 %v1688, %v1693
  %1697 = vrot.lane.b32.xlu0 %v1691, 64
  %v1698 = vpop.permute.xlu0 %1697
  %v1700 = vmul.f32 %v1688, %v1698
  %1702 = vrot.lane.b32.xlu0 %v1700, 64
  %v1703 = vpop.permute.xlu0 %1702
  %v1705 = vadd.f32 %v1695, %v1703
  %v1706 = vtanh.pop %v1705
  %1708 = vrot.lane.b32.xlu0 %v1706, 64
  %v1709 = vpop.permute.xlu0 %1708
  %v1711 = vmul.f32 %v1690, %v1709
  %v1713 = vrot.slane %v1711, 2
  %v1714 = vsel %vm175, %v1713, 0
  %1716 = vmatprep.subr.mxu0 0.0
  %1717 = vmatpush1.msra.mxu0 %v50
  %1718 = vmatprep.subr.mxu0 0.0
  %1719 = vmatpush1.msra.mxu0 %v51
  %1720 = vmatprep.subr.mxu0 0.0
  %1721 = vmatpush1.msra.mxu0 %v52
  %1722 = vmatprep.subr.mxu0 0.0
  %1723 = vmatpush1.msra.mxu0 %v53
  %1724 = vmatprep.subr.mxu0 0.0
  %1725 = vmatpush1.msra.mxu0 %v54
  %1726 = vmatprep.subr.mxu0 0.0
  %1727 = vmatpush1.msra.mxu0 %v55
  %1728 = vmatprep.subr.mxu0 0.0
  %1729 = vmatpush1.msra.mxu0 %v56
  %1730 = vmatprep.subr.mxu0 0.0
  %1731 = vmatpush1.msra.mxu0 %v57
  %1732 = vmatprep.subr.mxu0 0.0
  %1733 = vmatpush1.msra.mxu0 0.0
  %1734 = vmatprep.subr.mxu0 0.0
  %1735 = vmatpush1.msra.mxu0 0.0
  %1736 = vmatprep.subr.mxu0 0.0
  %1737 = vmatpush1.msra.mxu0 0.0
  %1738 = vmatprep.subr.mxu0 0.0
  %1739 = vmatpush1.msra.mxu0 0.0
  %1740 = vmatprep.subr.mxu0 0.0
  %1741 = vmatpush1.msra.mxu0 0.0
  %1742 = vmatprep.subr.mxu0 0.0
  %1743 = vmatpush1.msra.mxu0 0.0
  %1744 = vmatprep.subr.mxu0 0.0
  %1745 = vmatpush1.msra.mxu0 0.0
  %1746 = vmatprep.subr.mxu0 0.0
  %1747 = vmatpush1.msra.mxu0 0.0
  %1748 = vmatprep.subr.mxu0 0.0
  %1749 = vmatpush1.msra.mxu0 0.0
  %1750 = vmatprep.subr.mxu0 0.0
  %1751 = vmatpush1.msra.mxu0 0.0
  %1752 = vmatprep.subr.mxu0 0.0
  %1753 = vmatpush1.msra.mxu0 0.0
  %1754 = vmatprep.subr.mxu0 0.0
  %1755 = vmatpush1.msra.mxu0 0.0
  %1756 = vmatprep.subr.mxu0 0.0
  %1757 = vmatpush1.msra.mxu0 0.0
  %1758 = vmatprep.subr.mxu0 0.0
  %1759 = vmatpush1.msra.mxu0 0.0
  %1760 = vmatprep.subr.mxu0 0.0
  %1761 = vmatpush1.msra.mxu0 0.0
  %1762 = vmatprep.subr.mxu0 0.0
  %1763 = vmatpush1.msra.mxu0 0.0
  %1764 = vmatprep.subr.mxu0 0.0
  %1765 = vmatpush1.msra.mxu0 0.0
  %1766 = vmatprep.subr.mxu0 0.0
  %1767 = vmatpush1.msra.mxu0 0.0
  %1768 = vmatprep.subr.mxu0 0.0
  %1769 = vmatpush1.msra.mxu0 0.0
  %1770 = vmatprep.subr.mxu0 0.0
  %1771 = vmatpush1.msra.mxu0 0.0
  %1772 = vmatprep.subr.mxu0 0.0
  %1773 = vmatpush1.msra.mxu0 0.0
  %1774 = vmatprep.subr.mxu0 0.0
  %1775 = vmatpush1.msra.mxu0 0.0
  %1776 = vmatprep.subr.mxu0 0.0
  %1777 = vmatpush1.msra.mxu0 0.0
  %1778 = vmatprep.subr.mxu0 0.0
  %1779 = vmatpush1.msra.mxu0 0.0
  %1780 = vmatprep.mubr.f32.mxu0 0.0
  %1781 = vmatmul.mubr.f32.gmra.mrb[0].mxu0 %v1714
  %v1782 = vpop.f32.mrb[0].mxu0
  %v1783 = vadd.f32 0.0, %v1782
  %v1784 = vpop.f32.mrb[0].mxu0
  %1785 = vdwg.mxu0
  %1787 = vrot.lane.b32.xlu0 %v1597, 64
  %v1788 = vpop.permute.xlu0 %1787
  %v1789 = vsel %vm355, %v1788, 0
  %1791 = vmatprep.subr.mxu0 0.0
  %1792 = vmatpush1.msra.mxu0 %v58
  %1793 = vmatprep.subr.mxu0 0.0
  %1794 = vmatpush1.msra.mxu0 %v59
  %1795 = vmatprep.subr.mxu0 0.0
  %1796 = vmatpush1.msra.mxu0 %v60
  %1797 = vmatprep.subr.mxu0 0.0
  %1798 = vmatpush1.msra.mxu0 %v61
  %1799 = vmatprep.subr.mxu0 0.0
  %1800 = vmatpush1.msra.mxu0 0.0
  %1801 = vmatprep.subr.mxu0 0.0
  %1802 = vmatpush1.msra.mxu0 0.0
  %1803 = vmatprep.subr.mxu0 0.0
  %1804 = vmatpush1.msra.mxu0 0.0
  %1805 = vmatprep.subr.mxu0 0.0
  %1806 = vmatpush1.msra.mxu0 0.0
  %1807 = vmatprep.subr.mxu0 0.0
  %1808 = vmatpush1.msra.mxu0 0.0
  %1809 = vmatprep.subr.mxu0 0.0
  %1810 = vmatpush1.msra.mxu0 0.0
  %1811 = vmatprep.subr.mxu0 0.0
  %1812 = vmatpush1.msra.mxu0 0.0
  %1813 = vmatprep.subr.mxu0 0.0
  %1814 = vmatpush1.msra.mxu0 0.0
  %1815 = vmatprep.subr.mxu0 0.0
  %1816 = vmatpush1.msra.mxu0 0.0
  %1817 = vmatprep.subr.mxu0 0.0
  %1818 = vmatpush1.msra.mxu0 0.0
  %1819 = vmatprep.subr.mxu0 0.0
  %1820 = vmatpush1.msra.mxu0 0.0
  %1821 = vmatprep.subr.mxu0 0.0
  %1822 = vmatpush1.msra.mxu0 0.0
  %1823 = vmatprep.subr.mxu0 0.0
  %1824 = vmatpush1.msra.mxu0 0.0
  %1825 = vmatprep.subr.mxu0 0.0
  %1826 = vmatpush1.msra.mxu0 0.0
  %1827 = vmatprep.subr.mxu0 0.0
  %1828 = vmatpush1.msra.mxu0 0.0
  %1829 = vmatprep.subr.mxu0 0.0
  %1830 = vmatpush1.msra.mxu0 0.0
  %1831 = vmatprep.subr.mxu0 0.0
  %1832 = vmatpush1.msra.mxu0 0.0
  %1833 = vmatprep.subr.mxu0 0.0
  %1834 = vmatpush1.msra.mxu0 0.0
  %1835 = vmatprep.subr.mxu0 0.0
  %1836 = vmatpush1.msra.mxu0 0.0
  %1837 = vmatprep.subr.mxu0 0.0
  %1838 = vmatpush1.msra.mxu0 0.0
  %1839 = vmatprep.subr.mxu0 0.0
  %1840 = vmatpush1.msra.mxu0 0.0
  %1841 = vmatprep.subr.mxu0 0.0
  %1842 = vmatpush1.msra.mxu0 0.0
  %1843 = vmatprep.subr.mxu0 0.0
  %1844 = vmatpush1.msra.mxu0 0.0
  %1845 = vmatprep.subr.mxu0 0.0
  %1846 = vmatpush1.msra.mxu0 0.0
  %1847 = vmatprep.subr.mxu0 0.0
  %1848 = vmatpush1.msra.mxu0 0.0
  %1849 = vmatprep.subr.mxu0 0.0
  %1850 = vmatpush1.msra.mxu0 0.0
  %1851 = vmatprep.subr.mxu0 0.0
  %1852 = vmatpush1.msra.mxu0 0.0
  %1853 = vmatprep.subr.mxu0 0.0
  %1854 = vmatpush1.msra.mxu0 0.0
  %1855 = vmatprep.mubr.f32.mxu0 0.0
  %1856 = vmatmul.mubr.f32.gmra.mrb[0].mxu0 %v1789
  %v1857 = vpop.f32.mrb[0].mxu0
  %v1858 = vadd.f32 %v1783, %v1857
  %v1859 = vpop.f32.mrb[0].mxu0
  %1860 = vdwg.mxu0
  %v1861 = vadd.f32 %v1858, %v171
  %v1862 = vxor.u32 %v1861, 2147483648
  %v1863 = vmul.f32 %v1862, 1.442695
  %v1864 = vpow.pop %v1863
  %v1865 = vadd.f32 %v1864, 1.0
  %v1866 = vrcp.pop %v1865
  %v1867 = vmul.f32 1.0, %v1866
  %v1868 = vtanh.pop %v1861
  %v1869 = vmul.f32 %v1867, %v1591
  %1871 = vrot.lane.b32.xlu0 %v1868, 32
  %v1872 = vpop.permute.xlu0 %1871
  %v1874 = vmul.f32 %v1867, %v1872
  %1876 = vrot.lane.b32.xlu0 %v1874, 32
  %v1877 = vpop.permute.xlu0 %1876
  %v1879 = vadd.f32 %v1869, %v1877
  %v1880 = vtanh.pop %v1879
  %1882 = vrot.lane.b32.xlu0 %v1880, 32
  %v1883 = vpop.permute.xlu0 %1882
  %v1885 = vmul.f32 %v1867, %v1883
  %v1886 = vld [vmem:[#allocation2 + $0x10] sm:$0x30]
  %v1887 = vld [vmem:[#allocation2 + $0x18] sm:$0x30]
  %1888 = vmatprep.subr.mxu0 %v35
  %1889 = vmatpush1.msra.mxu0 %v34
  %1890 = vmatprep.subr.mxu0 %v37
  %1891 = vmatpush1.msra.mxu0 %v36
  %1892 = vmatprep.subr.mxu0 %v39
  %1893 = vmatpush1.msra.mxu0 %v38
  %1894 = vmatprep.subr.mxu0 %v41
  %1895 = vmatpush1.msra.mxu0 %v40
  %1896 = vmatprep.subr.mxu0 %v43
  %1897 = vmatpush1.msra.mxu0 %v42
  %1898 = vmatprep.subr.mxu0 %v45
  %1899 = vmatpush1.msra.mxu0 %v44
  %1900 = vmatprep.subr.mxu0 %v47
  %1901 = vmatpush1.msra.mxu0 %v46
  %1902 = vmatprep.subr.mxu0 %v49
  %1903 = vmatpush1.msra.mxu0 %v48
  %1904 = vmatprep.subr.mxu0 0.0
  %1905 = vmatpush1.msra.mxu0 0.0
  %1906 = vmatprep.subr.mxu0 0.0
  %1907 = vmatpush1.msra.mxu0 0.0
  %1908 = vmatprep.subr.mxu0 0.0
  %1909 = vmatpush1.msra.mxu0 0.0
  %1910 = vmatprep.subr.mxu0 0.0
  %1911 = vmatpush1.msra.mxu0 0.0
  %1912 = vmatprep.subr.mxu0 0.0
  %1913 = vmatpush1.msra.mxu0 0.0
  %1914 = vmatprep.subr.mxu0 0.0
  %1915 = vmatpush1.msra.mxu0 0.0
  %1916 = vmatprep.subr.mxu0 0.0
  %1917 = vmatpush1.msra.mxu0 0.0
  %1918 = vmatprep.subr.mxu0 0.0
  %1919 = vmatpush1.msra.mxu0 0.0
  %1920 = vmatprep.subr.mxu0 0.0
  %1921 = vmatpush1.msra.mxu0 0.0
  %1922 = vmatprep.subr.mxu0 0.0
  %1923 = vmatpush1.msra.mxu0 0.0
  %1924 = vmatprep.subr.mxu0 0.0
  %1925 = vmatpush1.msra.mxu0 0.0
  %1926 = vmatprep.subr.mxu0 0.0
  %1927 = vmatpush1.msra.mxu0 0.0
  %1928 = vmatprep.subr.mxu0 0.0
  %1929 = vmatpush1.msra.mxu0 0.0
  %1930 = vmatprep.subr.mxu0 0.0
  %1931 = vmatpush1.msra.mxu0 0.0
  %1932 = vmatprep.subr.mxu0 0.0
  %1933 = vmatpush1.msra.mxu0 0.0
  %1934 = vmatprep.subr.mxu0 0.0
  %1935 = vmatpush1.msra.mxu0 0.0
  %1936 = vmatprep.subr.mxu0 0.0
  %1937 = vmatpush1.msra.mxu0 0.0
  %1938 = vmatprep.subr.mxu0 0.0
  %1939 = vmatpush1.msra.mxu0 0.0
  %1940 = vmatprep.subr.mxu0 0.0
  %1941 = vmatpush1.msra.mxu0 0.0
  %1942 = vmatprep.subr.mxu0 0.0
  %1943 = vmatpush1.msra.mxu0 0.0
  %1944 = vmatprep.subr.mxu0 0.0
  %1945 = vmatpush1.msra.mxu0 0.0
  %1946 = vmatprep.subr.mxu0 0.0
  %1947 = vmatpush1.msra.mxu0 0.0
  %1948 = vmatprep.subr.mxu0 0.0
  %1949 = vmatpush1.msra.mxu0 0.0
  %1950 = vmatprep.subr.mxu0 0.0
  %1951 = vmatpush1.msra.mxu0 0.0
  %1952 = vmatprep.mubr.f32.mxu0 0.0
  %1953 = vmatmul.mubr.f32.gmra.mrb[0].mxu0 %v1714
  %v1954 = vpop.f32.mrb[0].mxu0
  %v1955 = vadd.f32 0.0, %v1954
  %v1956 = vpop.f32.mrb[0].mxu0
  %v1957 = vadd.f32 0.0, %v1956
  %1958 = vdwg.mxu0
  %v1961 = vrot.slane %v1955, 4
  %v1962 = vrot.slane %v1957, 4
  %v1965 = vadd.f32 %v1886, %v1961
  %v1966 = vadd.f32 %v1887, %v1962
  %v1967 = vxor.u32 %v1965, 2147483648
  %v1968 = vxor.u32 %v1966, 2147483648
  %v1969 = vmul.f32 %v1967, 1.442695
  %v1970 = vpow.pop %v1969
  %v1971 = vmul.f32 %v1968, 1.442695
  %v1972 = vpow.pop %v1971
  %v1973 = vadd.f32 %v1970, 1.0
  %v1974 = vadd.f32 %v1972, 1.0
  %v1975 = vrcp.pop %v1973
  %v1976 = vmul.f32 1.0, %v1975
  %v1977 = vrcp.pop %v1974
  %v1978 = vmul.f32 1.0, %v1977
  %v1979 = vtanh.pop %v1966
  %v1981 = vrot.slane %v1705, 6
  %v1983 = vmul.f32 %v1976, %v1981
  %1985 = vrot.lane.b32.xlu0 %v1979, 64
  %v1986 = vpop.permute.xlu0 %1985
  %v1988 = vmul.f32 %v1976, %v1986
  %1990 = vrot.lane.b32.xlu0 %v1988, 64
  %v1991 = vpop.permute.xlu0 %1990
  %v1993 = vadd.f32 %v1983, %v1991
  %v1994 = vtanh.pop %v1993
  %1996 = vrot.lane.b32.xlu0 %v1994, 64
  %v1997 = vpop.permute.xlu0 %1996
  %v1999 = vmul.f32 %v1978, %v1997
  %v2001 = vrot.slane %v1999, 4
  %v2002 = vsel %vm175, %v2001, 0
  %2004 = vmatprep.subr.mxu0 0.0
  %2005 = vmatpush1.msra.mxu0 %v50
  %2006 = vmatprep.subr.mxu0 0.0
  %2007 = vmatpush1.msra.mxu0 %v51
  %2008 = vmatprep.subr.mxu0 0.0
  %2009 = vmatpush1.msra.mxu0 %v52
  %2010 = vmatprep.subr.mxu0 0.0
  %2011 = vmatpush1.msra.mxu0 %v53
  %2012 = vmatprep.subr.mxu0 0.0
  %2013 = vmatpush1.msra.mxu0 %v54
  %2014 = vmatprep.subr.mxu0 0.0
  %2015 = vmatpush1.msra.mxu0 %v55
  %2016 = vmatprep.subr.mxu0 0.0
  %2017 = vmatpush1.msra.mxu0 %v56
  %2018 = vmatprep.subr.mxu0 0.0
  %2019 = vmatpush1.msra.mxu0 %v57
  %2020 = vmatprep.subr.mxu0 0.0
  %2021 = vmatpush1.msra.mxu0 0.0
  %2022 = vmatprep.subr.mxu0 0.0
  %2023 = vmatpush1.msra.mxu0 0.0
  %2024 = vmatprep.subr.mxu0 0.0
  %2025 = vmatpush1.msra.mxu0 0.0
  %2026 = vmatprep.subr.mxu0 0.0
  %2027 = vmatpush1.msra.mxu0 0.0
  %2028 = vmatprep.subr.mxu0 0.0
  %2029 = vmatpush1.msra.mxu0 0.0
  %2030 = vmatprep.subr.mxu0 0.0
  %2031 = vmatpush1.msra.mxu0 0.0
  %2032 = vmatprep.subr.mxu0 0.0
  %2033 = vmatpush1.msra.mxu0 0.0
  %2034 = vmatprep.subr.mxu0 0.0
  %2035 = vmatpush1.msra.mxu0 0.0
  %2036 = vmatprep.subr.mxu0 0.0
  %2037 = vmatpush1.msra.mxu0 0.0
  %2038 = vmatprep.subr.mxu0 0.0
  %2039 = vmatpush1.msra.mxu0 0.0
  %2040 = vmatprep.subr.mxu0 0.0
  %2041 = vmatpush1.msra.mxu0 0.0
  %2042 = vmatprep.subr.mxu0 0.0
  %2043 = vmatpush1.msra.mxu0 0.0
  %2044 = vmatprep.subr.mxu0 0.0
  %2045 = vmatpush1.msra.mxu0 0.0
  %2046 = vmatprep.subr.mxu0 0.0
  %2047 = vmatpush1.msra.mxu0 0.0
  %2048 = vmatprep.subr.mxu0 0.0
  %2049 = vmatpush1.msra.mxu0 0.0
  %2050 = vmatprep.subr.mxu0 0.0
  %2051 = vmatpush1.msra.mxu0 0.0
  %2052 = vmatprep.subr.mxu0 0.0
  %2053 = vmatpush1.msra.mxu0 0.0
  %2054 = vmatprep.subr.mxu0 0.0
  %2055 = vmatpush1.msra.mxu0 0.0
  %2056 = vmatprep.subr.mxu0 0.0
  %2057 = vmatpush1.msra.mxu0 0.0
  %2058 = vmatprep.subr.mxu0 0.0
  %2059 = vmatpush1.msra.mxu0 0.0
  %2060 = vmatprep.subr.mxu0 0.0
  %2061 = vmatpush1.msra.mxu0 0.0
  %2062 = vmatprep.subr.mxu0 0.0
  %2063 = vmatpush1.msra.mxu0 0.0
  %2064 = vmatprep.subr.mxu0 0.0
  %2065 = vmatpush1.msra.mxu0 0.0
  %2066 = vmatprep.subr.mxu0 0.0
  %2067 = vmatpush1.msra.mxu0 0.0
  %2068 = vmatprep.mubr.f32.mxu0 0.0
  %2069 = vmatmul.mubr.f32.gmra.mrb[0].mxu0 %v2002
  %v2070 = vpop.f32.mrb[0].mxu0
  %v2071 = vadd.f32 0.0, %v2070
  %v2072 = vpop.f32.mrb[0].mxu0
  %2073 = vdwg.mxu0
  %2075 = vrot.lane.b32.xlu0 %v1885, 64
  %v2076 = vpop.permute.xlu0 %2075
  %v2077 = vsel %vm355, %v2076, 0
  %2079 = vmatprep.subr.mxu0 0.0
  %2080 = vmatpush1.msra.mxu0 %v58
  %2081 = vmatprep.subr.mxu0 0.0
  %2082 = vmatpush1.msra.mxu0 %v59
  %2083 = vmatprep.subr.mxu0 0.0
  %2084 = vmatpush1.msra.mxu0 %v60
  %2085 = vmatprep.subr.mxu0 0.0
  %2086 = vmatpush1.msra.mxu0 %v61
  %2087 = vmatprep.subr.mxu0 0.0
  %2088 = vmatpush1.msra.mxu0 0.0
  %2089 = vmatprep.subr.mxu0 0.0
  %2090 = vmatpush1.msra.mxu0 0.0
  %2091 = vmatprep.subr.mxu0 0.0
  %2092 = vmatpush1.msra.mxu0 0.0
  %2093 = vmatprep.subr.mxu0 0.0
  %2094 = vmatpush1.msra.mxu0 0.0
  %2095 = vmatprep.subr.mxu0 0.0
  %2096 = vmatpush1.msra.mxu0 0.0
  %2097 = vmatprep.subr.mxu0 0.0
  %2098 = vmatpush1.msra.mxu0 0.0
  %2099 = vmatprep.subr.mxu0 0.0
  %2100 = vmatpush1.msra.mxu0 0.0
  %2101 = vmatprep.subr.mxu0 0.0
  %2102 = vmatpush1.msra.mxu0 0.0
  %2103 = vmatprep.subr.mxu0 0.0
  %2104 = vmatpush1.msra.mxu0 0.0
  %2105 = vmatprep.subr.mxu0 0.0
  %2106 = vmatpush1.msra.mxu0 0.0
  %2107 = vmatprep.subr.mxu0 0.0
  %2108 = vmatpush1.msra.mxu0 0.0
  %2109 = vmatprep.subr.mxu0 0.0
  %2110 = vmatpush1.msra.mxu0 0.0
  %2111 = vmatprep.subr.mxu0 0.0
  %2112 = vmatpush1.msra.mxu0 0.0
  %2113 = vmatprep.subr.mxu0 0.0
  %2114 = vmatpush1.msra.mxu0 0.0
  %2115 = vmatprep.subr.mxu0 0.0
  %2116 = vmatpush1.msra.mxu0 0.0
  %2117 = vmatprep.subr.mxu0 0.0
  %2118 = vmatpush1.msra.mxu0 0.0
  %2119 = vmatprep.subr.mxu0 0.0
  %2120 = vmatpush1.msra.mxu0 0.0
  %2121 = vmatprep.subr.mxu0 0.0
  %2122 = vmatpush1.msra.mxu0 0.0
  %2123 = vmatprep.subr.mxu0 0.0
  %2124 = vmatpush1.msra.mxu0 0.0
  %2125 = vmatprep.subr.mxu0 0.0
  %2126 = vmatpush1.msra.mxu0 0.0
  %2127 = vmatprep.subr.mxu0 0.0
  %2128 = vmatpush1.msra.mxu0 0.0
  %2129 = vmatprep.subr.mxu0 0.0
  %2130 = vmatpush1.msra.mxu0 0.0
  %2131 = vmatprep.subr.mxu0 0.0
  %2132 = vmatpush1.msra.mxu0 0.0
  %2133 = vmatprep.subr.mxu0 0.0
  %2134 = vmatpush1.msra.mxu0 0.0
  %2135 = vmatprep.subr.mxu0 0.0
  %2136 = vmatpush1.msra.mxu0 0.0
  %2137 = vmatprep.subr.mxu0 0.0
  %2138 = vmatpush1.msra.mxu0 0.0
  %2139 = vmatprep.subr.mxu0 0.0
  %2140 = vmatpush1.msra.mxu0 0.0
  %2141 = vmatprep.subr.mxu0 0.0
  %2142 = vmatpush1.msra.mxu0 0.0
  %2143 = vmatprep.mubr.f32.mxu0 0.0
  %2144 = vmatmul.mubr.f32.gmra.mrb[0].mxu0 %v2077
  %v2145 = vpop.f32.mrb[0].mxu0
  %v2146 = vadd.f32 %v2071, %v2145
  %v2147 = vpop.f32.mrb[0].mxu0
  %2148 = vdwg.mxu0
  %v2149 = vadd.f32 %v2146, %v171
  %v2150 = vxor.u32 %v2149, 2147483648
  %v2151 = vmul.f32 %v2150, 1.442695
  %v2152 = vpow.pop %v2151
  %v2153 = vadd.f32 %v2152, 1.0
  %v2154 = vrcp.pop %v2153
  %v2155 = vmul.f32 1.0, %v2154
  %v2156 = vtanh.pop %v2149
  %v2157 = vmul.f32 %v2155, %v1879
  %2159 = vrot.lane.b32.xlu0 %v2156, 32
  %v2160 = vpop.permute.xlu0 %2159
  %v2162 = vmul.f32 %v2155, %v2160
  %2164 = vrot.lane.b32.xlu0 %v2162, 32
  %v2165 = vpop.permute.xlu0 %2164
  %v2167 = vadd.f32 %v2157, %v2165
  %v2168 = vtanh.pop %v2167
  %2170 = vrot.lane.b32.xlu0 %v2168, 32
  %v2171 = vpop.permute.xlu0 %2170
  %v2173 = vmul.f32 %v2155, %v2171
  %v2174 = vld [vmem:[#allocation2 + $0x10] sm:$0xc0]
  %v2175 = vld [vmem:[#allocation2 + $0x18] sm:$0xc0]
  %2176 = vmatprep.subr.mxu0 %v35
  %2177 = vmatpush1.msra.mxu0 %v34
  %2178 = vmatprep.subr.mxu0 %v37
  %2179 = vmatpush1.msra.mxu0 %v36
  %2180 = vmatprep.subr.mxu0 %v39
  %2181 = vmatpush1.msra.mxu0 %v38
  %2182 = vmatprep.subr.mxu0 %v41
  %2183 = vmatpush1.msra.mxu0 %v40
  %2184 = vmatprep.subr.mxu0 %v43
  %2185 = vmatpush1.msra.mxu0 %v42
  %2186 = vmatprep.subr.mxu0 %v45
  %2187 = vmatpush1.msra.mxu0 %v44
  %2188 = vmatprep.subr.mxu0 %v47
  %2189 = vmatpush1.msra.mxu0 %v46
  %2190 = vmatprep.subr.mxu0 %v49
  %2191 = vmatpush1.msra.mxu0 %v48
  %2192 = vmatprep.subr.mxu0 0.0
  %2193 = vmatpush1.msra.mxu0 0.0
  %2194 = vmatprep.subr.mxu0 0.0
  %2195 = vmatpush1.msra.mxu0 0.0
  %2196 = vmatprep.subr.mxu0 0.0
  %2197 = vmatpush1.msra.mxu0 0.0
  %2198 = vmatprep.subr.mxu0 0.0
  %2199 = vmatpush1.msra.mxu0 0.0
  %2200 = vmatprep.subr.mxu0 0.0
  %2201 = vmatpush1.msra.mxu0 0.0
  %2202 = vmatprep.subr.mxu0 0.0
  %2203 = vmatpush1.msra.mxu0 0.0
  %2204 = vmatprep.subr.mxu0 0.0
  %2205 = vmatpush1.msra.mxu0 0.0
  %2206 = vmatprep.subr.mxu0 0.0
  %2207 = vmatpush1.msra.mxu0 0.0
  %2208 = vmatprep.subr.mxu0 0.0
  %2209 = vmatpush1.msra.mxu0 0.0
  %2210 = vmatprep.subr.mxu0 0.0
  %2211 = vmatpush1.msra.mxu0 0.0
  %2212 = vmatprep.subr.mxu0 0.0
  %2213 = vmatpush1.msra.mxu0 0.0
  %2214 = vmatprep.subr.mxu0 0.0
  %2215 = vmatpush1.msra.mxu0 0.0
  %2216 = vmatprep.subr.mxu0 0.0
  %2217 = vmatpush1.msra.mxu0 0.0
  %2218 = vmatprep.subr.mxu0 0.0
  %2219 = vmatpush1.msra.mxu0 0.0
  %2220 = vmatprep.subr.mxu0 0.0
  %2221 = vmatpush1.msra.mxu0 0.0
  %2222 = vmatprep.subr.mxu0 0.0
  %2223 = vmatpush1.msra.mxu0 0.0
  %2224 = vmatprep.subr.mxu0 0.0
  %2225 = vmatpush1.msra.mxu0 0.0
  %2226 = vmatprep.subr.mxu0 0.0
  %2227 = vmatpush1.msra.mxu0 0.0
  %2228 = vmatprep.subr.mxu0 0.0
  %2229 = vmatpush1.msra.mxu0 0.0
  %2230 = vmatprep.subr.mxu0 0.0
  %2231 = vmatpush1.msra.mxu0 0.0
  %2232 = vmatprep.subr.mxu0 0.0
  %2233 = vmatpush1.msra.mxu0 0.0
  %2234 = vmatprep.subr.mxu0 0.0
  %2235 = vmatpush1.msra.mxu0 0.0
  %2236 = vmatprep.subr.mxu0 0.0
  %2237 = vmatpush1.msra.mxu0 0.0
  %2238 = vmatprep.subr.mxu0 0.0
  %2239 = vmatpush1.msra.mxu0 0.0
  %2240 = vmatprep.mubr.f32.mxu0 0.0
  %2241 = vmatmul.mubr.f32.gmra.mrb[0].mxu0 %v2002
  %v2242 = vpop.f32.mrb[0].mxu0
  %v2243 = vadd.f32 0.0, %v2242
  %v2244 = vpop.f32.mrb[0].mxu0
  %v2245 = vadd.f32 0.0, %v2244
  %2246 = vdwg.mxu0
  %v2249 = vrot.slane %v2243, 2
  %v2250 = vrot.slane %v2245, 2
  %v2253 = vadd.f32 %v2174, %v2249
  %v2254 = vadd.f32 %v2175, %v2250
  %v2255 = vxor.u32 %v2253, 2147483648
  %v2256 = vxor.u32 %v2254, 2147483648
  %v2257 = vmul.f32 %v2255, 1.442695
  %v2258 = vpow.pop %v2257
  %v2259 = vmul.f32 %v2256, 1.442695
  %v2260 = vpow.pop %v2259
  %v2261 = vadd.f32 %v2258, 1.0
  %v2262 = vadd.f32 %v2260, 1.0
  %v2263 = vrcp.pop %v2261
  %v2264 = vmul.f32 1.0, %v2263
  %v2265 = vrcp.pop %v2262
  %v2266 = vmul.f32 1.0, %v2265
  %v2267 = vtanh.pop %v2254
  %v2269 = vrot.slane %v1993, 6
  %v2271 = vmul.f32 %v2264, %v2269
  %2273 = vrot.lane.b32.xlu0 %v2267, 64
  %v2274 = vpop.permute.xlu0 %2273
  %v2276 = vmul.f32 %v2264, %v2274
  %2278 = vrot.lane.b32.xlu0 %v2276, 64
  %v2279 = vpop.permute.xlu0 %2278
  %v2281 = vadd.f32 %v2271, %v2279
  %v2282 = vtanh.pop %v2281
  %2284 = vrot.lane.b32.xlu0 %v2282, 64
  %v2285 = vpop.permute.xlu0 %2284
  %v2287 = vmul.f32 %v2266, %v2285
  %v2289 = vrot.slane %v2287, 6
  %v2290 = vsel %vm175, %v2289, 0
  %2292 = vmatprep.subr.mxu0 0.0
  %2293 = vmatpush1.msra.mxu0 %v50
  %2294 = vmatprep.subr.mxu0 0.0
  %2295 = vmatpush1.msra.mxu0 %v51
  %2296 = vmatprep.subr.mxu0 0.0
  %2297 = vmatpush1.msra.mxu0 %v52
  %2298 = vmatprep.subr.mxu0 0.0
  %2299 = vmatpush1.msra.mxu0 %v53
  %2300 = vmatprep.subr.mxu0 0.0
  %2301 = vmatpush1.msra.mxu0 %v54
  %2302 = vmatprep.subr.mxu0 0.0
  %2303 = vmatpush1.msra.mxu0 %v55
  %2304 = vmatprep.subr.mxu0 0.0
  %2305 = vmatpush1.msra.mxu0 %v56
  %2306 = vmatprep.subr.mxu0 0.0
  %2307 = vmatpush1.msra.mxu0 %v57
  %2308 = vmatprep.subr.mxu0 0.0
  %2309 = vmatpush1.msra.mxu0 0.0
  %2310 = vmatprep.subr.mxu0 0.0
  %2311 = vmatpush1.msra.mxu0 0.0
  %2312 = vmatprep.subr.mxu0 0.0
  %2313 = vmatpush1.msra.mxu0 0.0
  %2314 = vmatprep.subr.mxu0 0.0
  %2315 = vmatpush1.msra.mxu0 0.0
  %2316 = vmatprep.subr.mxu0 0.0
  %2317 = vmatpush1.msra.mxu0 0.0
  %2318 = vmatprep.subr.mxu0 0.0
  %2319 = vmatpush1.msra.mxu0 0.0
  %2320 = vmatprep.subr.mxu0 0.0
  %2321 = vmatpush1.msra.mxu0 0.0
  %2322 = vmatprep.subr.mxu0 0.0
  %2323 = vmatpush1.msra.mxu0 0.0
  %2324 = vmatprep.subr.mxu0 0.0
  %2325 = vmatpush1.msra.mxu0 0.0
  %2326 = vmatprep.subr.mxu0 0.0
  %2327 = vmatpush1.msra.mxu0 0.0
  %2328 = vmatprep.subr.mxu0 0.0
  %2329 = vmatpush1.msra.mxu0 0.0
  %2330 = vmatprep.subr.mxu0 0.0
  %2331 = vmatpush1.msra.mxu0 0.0
  %2332 = vmatprep.subr.mxu0 0.0
  %2333 = vmatpush1.msra.mxu0 0.0
  %2334 = vmatprep.subr.mxu0 0.0
  %2335 = vmatpush1.msra.mxu0 0.0
  %2336 = vmatprep.subr.mxu0 0.0
  %2337 = vmatpush1.msra.mxu0 0.0
  %2338 = vmatprep.subr.mxu0 0.0
  %2339 = vmatpush1.msra.mxu0 0.0
  %2340 = vmatprep.subr.mxu0 0.0
  %2341 = vmatpush1.msra.mxu0 0.0
  %2342 = vmatprep.subr.mxu0 0.0
  %2343 = vmatpush1.msra.mxu0 0.0
  %2344 = vmatprep.subr.mxu0 0.0
  %2345 = vmatpush1.msra.mxu0 0.0
  %2346 = vmatprep.subr.mxu0 0.0
  %2347 = vmatpush1.msra.mxu0 0.0
  %2348 = vmatprep.subr.mxu0 0.0
  %2349 = vmatpush1.msra.mxu0 0.0
  %2350 = vmatprep.subr.mxu0 0.0
  %2351 = vmatpush1.msra.mxu0 0.0
  %2352 = vmatprep.subr.mxu0 0.0
  %2353 = vmatpush1.msra.mxu0 0.0
  %2354 = vmatprep.subr.mxu0 0.0
  %2355 = vmatpush1.msra.mxu0 0.0
  %2356 = vmatprep.mubr.f32.mxu0 0.0
  %2357 = vmatmul.mubr.f32.gmra.mrb[0].mxu0 %v2290
  %v2358 = vpop.f32.mrb[0].mxu0
  %v2359 = vadd.f32 0.0, %v2358
  %v2360 = vpop.f32.mrb[0].mxu0
  %2361 = vdwg.mxu0
  %2363 = vrot.lane.b32.xlu0 %v2173, 64
  %v2364 = vpop.permute.xlu0 %2363
  %v2365 = vsel %vm355, %v2364, 0
  %2367 = vmatprep.subr.mxu0 0.0
  %2368 = vmatpush1.msra.mxu0 %v58
  %2369 = vmatprep.subr.mxu0 0.0
  %2370 = vmatpush1.msra.mxu0 %v59
  %2371 = vmatprep.subr.mxu0 0.0
  %2372 = vmatpush1.msra.mxu0 %v60
  %2373 = vmatprep.subr.mxu0 0.0
  %2374 = vmatpush1.msra.mxu0 %v61
  %2375 = vmatprep.subr.mxu0 0.0
  %2376 = vmatpush1.msra.mxu0 0.0
  %2377 = vmatprep.subr.mxu0 0.0
  %2378 = vmatpush1.msra.mxu0 0.0
  %2379 = vmatprep.subr.mxu0 0.0
  %2380 = vmatpush1.msra.mxu0 0.0
  %2381 = vmatprep.subr.mxu0 0.0
  %2382 = vmatpush1.msra.mxu0 0.0
  %2383 = vmatprep.subr.mxu0 0.0
  %2384 = vmatpush1.msra.mxu0 0.0
  %2385 = vmatprep.subr.mxu0 0.0
  %2386 = vmatpush1.msra.mxu0 0.0
  %2387 = vmatprep.subr.mxu0 0.0
  %2388 = vmatpush1.msra.mxu0 0.0
  %2389 = vmatprep.subr.mxu0 0.0
  %2390 = vmatpush1.msra.mxu0 0.0
  %2391 = vmatprep.subr.mxu0 0.0
  %2392 = vmatpush1.msra.mxu0 0.0
  %2393 = vmatprep.subr.mxu0 0.0
  %2394 = vmatpush1.msra.mxu0 0.0
  %2395 = vmatprep.subr.mxu0 0.0
  %2396 = vmatpush1.msra.mxu0 0.0
  %2397 = vmatprep.subr.mxu0 0.0
  %2398 = vmatpush1.msra.mxu0 0.0
  %2399 = vmatprep.subr.mxu0 0.0
  %2400 = vmatpush1.msra.mxu0 0.0
  %2401 = vmatprep.subr.mxu0 0.0
  %2402 = vmatpush1.msra.mxu0 0.0
  %2403 = vmatprep.subr.mxu0 0.0
  %2404 = vmatpush1.msra.mxu0 0.0
  %2405 = vmatprep.subr.mxu0 0.0
  %2406 = vmatpush1.msra.mxu0 0.0
  %2407 = vmatprep.subr.mxu0 0.0
  %2408 = vmatpush1.msra.mxu0 0.0
  %2409 = vmatprep.subr.mxu0 0.0
  %2410 = vmatpush1.msra.mxu0 0.0
  %2411 = vmatprep.subr.mxu0 0.0
  %2412 = vmatpush1.msra.mxu0 0.0
  %2413 = vmatprep.subr.mxu0 0.0
  %2414 = vmatpush1.msra.mxu0 0.0
  %2415 = vmatprep.subr.mxu0 0.0
  %2416 = vmatpush1.msra.mxu0 0.0
  %2417 = vmatprep.subr.mxu0 0.0
  %2418 = vmatpush1.msra.mxu0 0.0
  %2419 = vmatprep.subr.mxu0 0.0
  %2420 = vmatpush1.msra.mxu0 0.0
  %2421 = vmatprep.subr.mxu0 0.0
  %2422 = vmatpush1.msra.mxu0 0.0
  %2423 = vmatprep.subr.mxu0 0.0
  %2424 = vmatpush1.msra.mxu0 0.0
  %2425 = vmatprep.subr.mxu0 0.0
  %2426 = vmatpush1.msra.mxu0 0.0
  %2427 = vmatprep.subr.mxu0 0.0
  %2428 = vmatpush1.msra.mxu0 0.0
  %2429 = vmatprep.subr.mxu0 0.0
  %2430 = vmatpush1.msra.mxu0 0.0
  %2431 = vmatprep.mubr.f32.mxu0 0.0
  %2432 = vmatmul.mubr.f32.gmra.mrb[0].mxu0 %v2365
  %v2433 = vpop.f32.mrb[0].mxu0
  %v2434 = vadd.f32 %v2359, %v2433
  %v2435 = vpop.f32.mrb[0].mxu0
  %2436 = vdwg.mxu0
  %v2437 = vadd.f32 %v2434, %v171
  %v2438 = vxor.u32 %v2437, 2147483648
  %v2439 = vmul.f32 %v2438, 1.442695
  %v2440 = vpow.pop %v2439
  %v2441 = vadd.f32 %v2440, 1.0
  %v2442 = vrcp.pop %v2441
  %v2443 = vmul.f32 1.0, %v2442
  %v2444 = vtanh.pop %v2437
  %v2445 = vmul.f32 %v2443, %v2167
  %2447 = vrot.lane.b32.xlu0 %v2444, 32
  %v2448 = vpop.permute.xlu0 %2447
  %v2450 = vmul.f32 %v2443, %v2448
  %2452 = vrot.lane.b32.xlu0 %v2450, 32
  %v2453 = vpop.permute.xlu0 %2452
  %v2455 = vadd.f32 %v2445, %v2453
  %v2456 = vtanh.pop %v2455
  %2458 = vrot.lane.b32.xlu0 %v2456, 32
  %v2459 = vpop.permute.xlu0 %2458
  %v2461 = vmul.f32 %v2443, %v2459
  %v2462 = vld [vmem:[%s7] sm:$0x1]
  %v2464 = vlaneseq
  %v2465 = vshrl.u32 %v2464, 7
  %v2466 = vsub.s32 0, %v2465
  %v2467 = vrot.slane %v2462, %v2466
  %2468 = vrot.lane.b32.xlu0 %v2467, 64
  %v2469 = vpop.permute.xlu0 %2468
  %v2471 = vmul.f32 %v2461, %v2469
  %2473 = vrot.lane.b32.xlu0 %v2471, 64
  %v2474 = vpop.permute.xlu0 %2473
  %vm2476 = vcmask 254976
  %v2477 = vsel %vm2476, %v2474, 0.0
  %2478 = vadd.xlane.f32.xlu0 %v2477
  %v2479 = vpop.xlane.xlu0 %2478
  %v2480 = vld [vmem:[#allocation3] sm:$0x1]
  %v2482 = vlaneseq
  %v2483 = vshrl.u32 %v2482, 7
  %v2484 = vsub.s32 0, %v2483
  %v2485 = vrot.slane %v2480, %v2484
  %v2487 = vadd.f32 %v2479, %v2485
  %vm2488 = vcmask 1024
  %2489 = vst.msk [vmem:[%s9] sm:$0x3] %vm2488, %v2487
  // Predicated region
  $region38: #{lstm_classifier_forward.1} parent=0 // pred_check
    _
  $region39: #{lstm_classifier_forward.1} parent=0 // pred_check_branch
    %2491 = sbr.rel (0) target = $region41
  $region40: #{lstm_classifier_forward.1} parent=0 // pred_region
    _
  $region41: #{lstm_classifier_forward.1} parent=0 // pred_fallthru
    _
  // Predicated region
  $region42: #{lstm_classifier_forward.1} parent=0 // pred_check
    _
  $region43: #{lstm_classifier_forward.1} parent=0 // pred_check_branch
    %2493 = sbr.rel (0) target = $region45
  $region44: #{lstm_classifier_forward.1} parent=0 // pred_region
    _
  $region45: #{lstm_classifier_forward.1} parent=0 // pred_fallthru
    _

</llo_original>
